<compile_context>
chip_gen: v5e
topology: v5e:2x2
jax: 0.10.0
libtpu: 0.0.40
codegen_flags: <defaults>
</compile_context>

<pallas_src>
import functools

import jax
import jax.numpy as jnp
from jax import lax
from jax.experimental import pallas as pl
from jax.experimental.pallas import tpu as pltpu

LANES = 128  # every channel / lane-packed axis lives on a full 128-lane slab


def _round_up(n, m):
    return ((n + m - 1) // m) * m


# ----------------------------- Pallas kernel --------------------------------

def _make_multipath_kernel(path_cfgs, b_blk, l_final):
    """path_cfgs: per path, per layer dict of *static* ints:
         K, S, Cin, Co, M (rows computed), Mp (scratch rows per sample),
         w (slab indices into the stacked weight array), b (bias row index),
         scr (scratch index; only for non-final layers)."""
    n_paths = len(path_cfgs)

    def kernel(*refs):
        x_refs = refs[:n_paths]
        w_ref = refs[n_paths]
        b_ref = refs[n_paths + 1]
        o_ref = refs[n_paths + 2]
        scratch = refs[n_paths + 3:]

        def dot(a, w):
            return jnp.dot(a, w, preferred_element_type=jnp.float32)

        def bn_relu(acc, bias_idx):
            # folded-BatchNorm bias + ReLU epilogue, f32 on the VPU.
            return jnp.maximum(acc + b_ref[pl.ds(bias_idx, 1), :], 0.0)

        # ---- layer 1 of every path: ONE lane-packed contraction, with all
        # ---- b_blk samples of the grid step stacked into the MXU M dimension.
        for pi, cfg in enumerate(path_cfgs):
            c0 = cfg[0]
            y = bn_relu(dot(x_refs[pi][...], w_ref[c0["w"][0]]), c0["b"])
            scratch[c0["scr"]][...] = y        # f32, channels replicated per
            #                                   # stride_next lane blocks

        # ---- remaining (tiny) layers: space-to-depth pack + two dots each.
        finals = [[None] * b_blk for _ in range(n_paths)]
        for pi, cfg in enumerate(path_cfgs):
            prev = cfg[0]
            for li in range(1, len(cfg)):
                c = cfg[li]
                S, Cin, M = c["S"], c["Cin"], c["M"]
                R = M + 1                      # +1 row for the shifted operand
                prev_ref = scratch[prev["scr"]]
                # Producer wrote its Cin channels replicated at lane blocks
                # [j*Cin, (j+1)*Cin), j = 0..S-1, so the s2d pack is a lane
                # mask + add (pure VPU), not a cross-lane move.  (hoisted iota)
                lane = lax.broadcasted_iota(jnp.int32, (R, LANES), 1)
                sels = [(lane >= j * Cin) & (lane < (j + 1) * Cin)
                        for j in range(S)]
                for b in range(b_blk):
                    base = b * prev["Mp"]
                    s2d = None
                    for j in range(S):
                        yj = prev_ref[pl.ds(base + j, R, stride=S), :]
                        yj = jnp.where(sels[j], yj, 0)
                        s2d = yj if s2d is None else s2d + yj
                    s2d = s2d.astype(jnp.bfloat16)   # one cast per layer
                    # conv as two contractions: W0 = taps 0..S-1 (block t),
                    # W1 = taps S..K-1 (block t+1); accumulator starts from
                    # the first dot (no zeros+add).
                    acc = dot(s2d[0:M], w_ref[c["w"][0]])
                    acc = acc + dot(s2d[1:R], w_ref[c["w"][1]])
                    y = bn_relu(acc, c["b"])
                    if li < len(cfg) - 1:
                        scratch[c["scr"]][pl.ds(b * c["Mp"], M), :] = y
                    else:
                        finals[pi][b] = y            # (l_final, 128) f32
                prev = c

        # ---- channel concat of the paths.
        # Invariant (documented per review): path 1's final weights/bias live
        # only in lanes [0, C1), path 2's only in [C1, C1+C2); all other lanes
        # of both slabs/biases are exactly zero and ReLU(0) == 0, so adding
        # the two lane-disjoint slabs IS the channel concatenation.
        for b in range(b_blk):
            total = finals[0][b]
            for pi in range(1, n_paths):
                total = total + finals[pi][b]
            o_ref[pl.ds(b * l_final, l_final), :] = total

    return kernel


# ------------------------------ JAX wrapper ----------------------------------

def _build_configs(params, L):
    paths = [params["path1"], params["path2"]]
    path_cfgs, L_final = [], None
    for p in paths:
        cfg, cur_L = [], L
        for (w, scale, bias, stride) in p:
            Co, Cin, K = w.shape
            L_out = (cur_L - K) // stride + 1
            assert L_out >= 1
            assert K <= 2 * stride, "receptive field must span <= 2 s2d blocks"
            cfg.append(dict(K=K, S=stride, Cin=Cin, Co=Co, L_out=L_out))
            cur_L = L_out
        if L_final is None:
            L_final = cur_L
        assert cur_L == L_final, "paths must emit equal lengths for concat"
        # rows each layer must make available to its consumer (back to front)
        need = [0] * len(cfg)
        need[-1] = cfg[-1]["L_out"]
        for l in range(len(cfg) - 2, -1, -1):
            need[l] = cfg[l + 1]["S"] * (need[l + 1] + 1)
        for l, c in enumerate(cfg):
            c["M"] = _round_up(need[l], 8) if l == 0 else need[l]
            c["Mp"] = _round_up(c["M"], 8)
        # lane-packing constraints + explicit in-bounds checks (review concern)
        assert 2 * cfg[0]["S"] * cfg[0]["Cin"] <= LANES
        for l in range(1, len(cfg)):
            assert cfg[l]["S"] * cfg[l]["Cin"] <= LANES
            assert cfg[l]["S"] * (cfg[l]["M"] + 1) <= cfg[l - 1]["Mp"], (
                "s2d pack would read past the producer's scratch")
        path_cfgs.append(cfg)
    return path_cfgs, L_final


def _prep_weights(params, path_cfgs, C1):
    """Fold BN scale into the conv weights, lay them out as (128,128) slabs
    (rows = lane-packed taps x C_in, cols = output channels, replicated at the
    consumer's stride blocks for non-final layers), cast to bf16."""
    paths = [params["path1"], params["path2"]]
    slabs, biases = [], []
    for pi, (p, cfg) in enumerate(zip(paths, path_cfgs)):
        for li, ((w, scale, bvec, stride), c) in enumerate(zip(p, cfg)):
            K, S, Cin, Co = c["K"], c["S"], c["Cin"], c["Co"]
            is_final = li == len(p) - 1
            rep = 1 if is_final else cfg[li + 1]["S"]
            col_off = (0 if pi == 0 else C1) if is_final else 0
            assert col_off + rep * Co <= LANES
            wf = (w * scale[:, None, None]).astype(jnp.float32)   # (Co,Cin,K)
            wk = jnp.transpose(wf, (2, 1, 0))                     # (K,Cin,Co)

            def place(rows):                                      # (n, Co)
                slab = jnp.zeros((LANES, LANES), jnp.float32)
                n = rows.shape[0]
                for r in range(rep):
                    off = col_off + r * Co
                    slab = slab.at[:n, off:off + Co].set(rows)
                return slab

            if li == 0:   # single slab for the wrapper-packed (2S x Cin) window
                c["w"] = (len(slabs),)
                slabs.append(place(wk.reshape(K * Cin, Co)))
            else:         # W0 = taps 0..S-1, W1 = taps S..K-1
                c["w"] = (len(slabs), len(slabs) + 1)
                slabs.append(place(wk[:S].reshape(S * Cin, Co)))
                slabs.append(place(wk[S:].reshape((K - S) * Cin, Co)))
            bp = jnp.zeros((LANES,), jnp.float32)
            for r in range(rep):
                off = col_off + r * Co
                bp = bp.at[off:off + Co].set(bvec)
            c["b"] = len(biases)
            biases.append(bp)
    w_all = jnp.stack(slabs).astype(jnp.bfloat16)                 # (n,128,128)
    nb = _round_up(len(biases), 8)
    b_all = jnp.zeros((nb, LANES), jnp.float32).at[:len(biases)].set(
        jnp.stack(biases))
    return w_all, b_all


def _build_im2col(x_blc, cfg0):
    """Lane-packed (2*S x Cin) windows for layer 1, bf16, zero-padded in time."""
    B, L, _ = x_blc.shape
    S, Cin, M = cfg0["S"], cfg0["Cin"], cfg0["Cin"] and cfg0["M"]
    Cin = cfg0["Cin"]
    need_L = max((M + 1) * S, L)
    xp = jnp.zeros((B, need_L, Cin), jnp.float32).at[:, :L, :].set(x_blc)
    idx = jnp.arange(M)[:, None] * S + jnp.arange(2 * S)[None, :]   # (M, 2S)
    win = xp[:, idx, :].reshape(B, M, 2 * S * Cin)
    out = jnp.zeros((B, M, LANES), jnp.float32)
    out = out.at[:, :, :2 * S * Cin].set(win)
    return out.astype(jnp.bfloat16)


def multipath_forward(x_ncl, params):
    """MultiPath.forward. x_ncl: (B, Ci, L) f32 -> (B, C1+C2, L_final)."""
    B, Ci, L = x_ncl.shape
    path_cfgs, L_final = _build_configs(params, L)
    C1 = path_cfgs[0][-1]["Co"]
    C2 = path_cfgs[1][-1]["Co"]

    w_all, b_all = _prep_weights(params, path_cfgs, C1)

    # Batch blocking: as many samples per grid step as possible while keeping
    # >= 2 grid steps, so the "parallel" batch axis still shards across both
    # TensorCores on v7x.
    b_blk = 1
    for d in range(B // 2, 0, -1):
        if B % d == 0:
            b_blk = d
            break
    n_steps = B // b_blk

    # Wrapper-side space-to-depth im2col of the raw input, pre-cast to bf16.
    x_blc = jnp.transpose(x_ncl, (0, 2, 1)).astype(jnp.float32)   # (B, L, Ci)
    xs = []
    for cfg in path_cfgs:
        im = _build_im2col(x_blc, cfg[0])                         # (B, M1, 128)
        xs.append(im.reshape(n_steps, b_blk * cfg[0]["M"], LANES))

    # One f32 VMEM scratch per non-final layer (intermediates never touch HBM).
    scratch_shapes = []
    for cfg in path_cfgs:
        for c in cfg[:-1]:
            c["scr"] = len(scratch_shapes)
            scratch_shapes.append(
                pltpu.VMEM((b_blk * c["Mp"], LANES), jnp.float32))

    m1_p1 = b_blk * path_cfgs[0][0]["M"]
    m1_p2 = b_blk * path_cfgs[1][0]["M"]
    in_specs = [
        pl.BlockSpec((None, m1_p1, LANES), lambda i: (i, 0, 0)),
        pl.BlockSpec((None, m1_p2, LANES), lambda i: (i, 0, 0)),
        # Constant block index: weights/biases are DMA'd into VMEM once for the
        # whole grid.  (pl.Buffered(1) could drop the second buffer if these
        # ever grow; at ~70 KB total it is irrelevant here.)
        pl.BlockSpec(w_all.shape, lambda i: (0, 0, 0)),
        pl.BlockSpec(b_all.shape, lambda i: (0, 0)),
    ]
    out_specs = pl.BlockSpec((None, b_blk * L_final, LANES),
                             lambda i: (i, 0, 0))

    flops = 0
    for cfg in path_cfgs:
        flops += 2 * b_blk * cfg[0]["M"] * LANES * LANES
        for c in cfg[1:]:
            flops += 2 * 2 * b_blk * c["M"] * LANES * LANES
    flops *= n_steps
    bytes_accessed = int(sum(x.size for x in xs) * 2 + w_all.size * 2
                         + b_all.size * 4
                         + n_steps * b_blk * L_final * LANES * 4)

    out = pl.pallas_call(
        _make_multipath_kernel(path_cfgs, b_blk, L_final),
        out_shape=jax.ShapeDtypeStruct((n_steps, b_blk * L_final, LANES),
                                       jnp.float32),
        grid=(n_steps,),
        in_specs=in_specs,
        out_specs=out_specs,
        scratch_shapes=scratch_shapes,
        compiler_params=pltpu.CompilerParams(
            dimension_semantics=("parallel",)),
        cost_estimate=pl.CostEstimate(flops=int(flops), transcendentals=0,
                                      bytes_accessed=bytes_accessed),
    )(*xs, w_all, b_all)

    y = out.reshape(B, L_final, LANES)[:, :, :C1 + C2]
    return jnp.transpose(y, (0, 2, 1))                # -> (B, C1+C2, L_final)


# --------------------------- parameter creation ------------------------------

def _make_layer_params(key, Ci, Co, K, stride, eps=1e-5):
    kw, kg, kb, km, kv = jax.random.split(key, 5)
    fan_in = Ci * K
    bound = 1.0 / jnp.sqrt(fan_in)
    w = jax.random.uniform(kw, (Co, Ci, K), jnp.float32, -bound, bound)
    gamma = 1.0 + 0.1 * jax.random.normal(kg, (Co,), jnp.float32)
    beta = 0.1 * jax.random.normal(kb, (Co,), jnp.float32)
    mean = 0.05 * jax.random.normal(km, (Co,), jnp.float32)
    var = 0.5 + 0.2 * jnp.abs(jax.random.normal(kv, (Co,), jnp.float32))
    scale = gamma / jnp.sqrt(var + eps)
    bias = beta - mean * scale
    return (w, scale, bias, stride)


def make_multipath_params(key, Ci, Co):
    C1 = Co * 3 // 4
    C2 = Co // 4
    keys = jax.random.split(key, 5)
    path1 = [
        _make_layer_params(keys[0], Ci, C1, 19, 10),
        _make_layer_params(keys[1], C1, C1, 19, 10),
    ]
    path2 = [
        _make_layer_params(keys[2], Ci, C2, 9, 5),
        _make_layer_params(keys[3], C2, C2, 9, 5),
        _make_layer_params(keys[4], C2, C2, 7, 4),
    ]
    return {"path1": path1, "path2": path2}


# ------------------------------ reference -----------------------------------

def _ref_conv_bn_relu(x_ncl, w, scale, bias, stride):
    y = jax.lax.conv_general_dilated(
        x_ncl, w, window_strides=(stride,), padding="VALID",
        dimension_numbers=("NCH", "OIH", "NCH"),
        precision=jax.lax.Precision.HIGHEST)
    y = y * scale[None, :, None] + bias[None, :, None]
    return jnp.maximum(y, 0.0)


def multipath_reference(x_ncl, params):
    y1 = x_ncl
    for (w, s, b, stride) in params["path1"]:
        y1 = _ref_conv_bn_relu(y1, w, s, b, stride)
    y2 = x_ncl
    for (w, s, b, stride) in params["path2"]:
        y2 = _ref_conv_bn_relu(y2, w, s, b, stride)
    return jnp.concatenate([y1, y2], axis=1)


# --------------------------------- main --------------------------------------

if __name__ == "__main__":
    B, Ci, Co, L = 2, 4, 8, 400   # L=400 makes both paths emit length 3

    key = jax.random.PRNGKey(0)
    kx, kp = jax.random.split(key)
    x = jax.random.normal(kx, (B, Ci, L), jnp.float32)
    params = make_multipath_params(kp, Ci, Co)

    fwd = jax.jit(functools.partial(multipath_forward, params=params))
    y = fwd(x)
    jax.block_until_ready(y)

    y_ref = multipath_reference(x, params)
    jax.block_until_ready(y_ref)

    assert y.shape == (B, Co, 3), y.shape
    # bf16 MXU operands vs f32 HIGHEST reference: 2e-2 tolerance.
    max_err = float(jnp.max(jnp.abs(y - y_ref)))
    assert jnp.allclose(y, y_ref, rtol=2e-2, atol=2e-2), max_err
    print("KERNEL_OK")
</pallas_src>

<mosaic_0001>
module attributes {stable_mosaic.version = 11 : i64} {
  func.func @kernel(%arg0: i32, %arg1: memref<1x40x128xbf16, #tpu.memory_space<vmem>>, %arg2: memref<1x88x128xbf16, #tpu.memory_space<vmem>>, %arg3: memref<8x128x128xbf16, #tpu.memory_space<vmem>>, %arg4: memref<8x128xf32, #tpu.memory_space<vmem>>, %arg5: memref<1x3x128xf32, #tpu.memory_space<vmem>>, %arg6: memref<40x128xf32, #tpu.memory_space<vmem>>, %arg7: memref<88x128xf32, #tpu.memory_space<vmem>>, %arg8: memref<16x128xf32, #tpu.memory_space<vmem>>) attributes {dimension_semantics = [#tpu.dimension_semantics<parallel>], iteration_bounds = array<i64: 2>, scalar_prefetch = 0 : i64, scratch_operands = 3 : i64, tpu.core_type = #tpu.core_type<tc>, window_params = [{transform_indices = @transform_0, window_bounds = array<i64: 1, 40, 128>}, {transform_indices = @transform_1, window_bounds = array<i64: 1, 88, 128>}, {pipeline_mode = #tpu.pipeline_mode<synchronous>, transform_indices = @transform_2, window_bounds = array<i64: 8, 128, 128>}, {pipeline_mode = #tpu.pipeline_mode<synchronous>, transform_indices = @transform_3, window_bounds = array<i64: 8, 128>}, {transform_indices = @transform_4, window_bounds = array<i64: 1, 3, 128>}]} {
    %c0 = arith.constant 0 : index
    %c0_0 = arith.constant 0 : index
    %c0_1 = arith.constant 0 : index
    %0 = vector.load %arg1[%c0, %c0_0, %c0_1] : memref<1x40x128xbf16, #tpu.memory_space<vmem>>, vector<1x40x128xbf16>
    %1 = vector.shape_cast %0 : vector<1x40x128xbf16> to vector<40x128xbf16>
    %c0_2 = arith.constant 0 : index
    %c0_3 = arith.constant 0 : index
    %c0_4 = arith.constant 0 : index
    %2 = vector.load %arg3[%c0_2, %c0_3, %c0_4] : memref<8x128x128xbf16, #tpu.memory_space<vmem>>, vector<1x128x128xbf16>
    %3 = vector.shape_cast %2 : vector<1x128x128xbf16> to vector<128x128xbf16>
    %cst = arith.constant dense<0.000000e+00> : vector<40x128xf32>
    %4 = tpu.matmul %1, %3, %cst {dimension_numbers = #tpu.dot_dimension_numbers<[1], [0], [0], [1], [0, 0, 1, 1], [], []>} : vector<40x128xbf16>, vector<128x128xbf16>, vector<40x128xf32> -> vector<40x128xf32>
    %c0_5 = arith.constant 0 : index
    %c0_6 = arith.constant 0 : index
    %5 = vector.load %arg4[%c0_5, %c0_6] : memref<8x128xf32, #tpu.memory_space<vmem>>, vector<1x128xf32>
    %6 = vector.broadcast %5 : vector<1x128xf32> to vector<40x128xf32>
    %7 = arith.addf %4, %6 : vector<40x128xf32>
    %cst_7 = arith.constant 0.000000e+00 : f32
    %8 = vector.broadcast %cst_7 : f32 to vector<40x128xf32>
    %9 = arith.maximumf %7, %8 : vector<40x128xf32>
    %c0_8 = arith.constant 0 : index
    %c0_9 = arith.constant 0 : index
    %10 = vector.load %arg6[%c0_8, %c0_9] : memref<40x128xf32, #tpu.memory_space<vmem>>, vector<40x128xf32>
    tpu.vector_store %arg6[%c0_8, %c0_9], %9 {strides = array<i32>} : memref<40x128xf32, #tpu.memory_space<vmem>>, vector<40x128xf32>,
    %c0_10 = arith.constant 0 : index
    %c0_11 = arith.constant 0 : index
    %c0_12 = arith.constant 0 : index
    %11 = vector.load %arg2[%c0_10, %c0_11, %c0_12] : memref<1x88x128xbf16, #tpu.memory_space<vmem>>, vector<1x88x128xbf16>
    %12 = vector.shape_cast %11 : vector<1x88x128xbf16> to vector<88x128xbf16>
    %c3 = arith.constant 3 : index
    %c0_13 = arith.constant 0 : index
    %c0_14 = arith.constant 0 : index
    %13 = vector.load %arg3[%c3, %c0_13, %c0_14] : memref<8x128x128xbf16, #tpu.memory_space<vmem>>, vector<1x128x128xbf16>
    %14 = vector.shape_cast %13 : vector<1x128x128xbf16> to vector<128x128xbf16>
    %cst_15 = arith.constant dense<0.000000e+00> : vector<88x128xf32>
    %15 = tpu.matmul %12, %14, %cst_15 {dimension_numbers = #tpu.dot_dimension_numbers<[1], [0], [0], [1], [0, 0, 1, 1], [], []>} : vector<88x128xbf16>, vector<128x128xbf16>, vector<88x128xf32> -> vector<88x128xf32>
    %c2 = arith.constant 2 : index
    %c0_16 = arith.constant 0 : index
    %16 = vector.load %arg4[%c2, %c0_16] : memref<8x128xf32, #tpu.memory_space<vmem>>, vector<1x128xf32>
    %17 = vector.broadcast %16 : vector<1x128xf32> to vector<88x128xf32>
    %18 = arith.addf %15, %17 : vector<88x128xf32>
    %cst_17 = arith.constant 0.000000e+00 : f32
    %19 = vector.broadcast %cst_17 : f32 to vector<88x128xf32>
    %20 = arith.maximumf %18, %19 : vector<88x128xf32>
    %c0_18 = arith.constant 0 : index
    %c0_19 = arith.constant 0 : index
    %21 = vector.load %arg7[%c0_18, %c0_19] : memref<88x128xf32, #tpu.memory_space<vmem>>, vector<88x128xf32>
    tpu.vector_store %arg7[%c0_18, %c0_19], %20 {strides = array<i32>} : memref<88x128xf32, #tpu.memory_space<vmem>>, vector<88x128xf32>,
    %22 = tpu.iota {dimensions = array<i32: 1>} : vector<4x128xi32>
    %c0_i32 = arith.constant 0 : i32
    %23 = vector.broadcast %c0_i32 : i32 to vector<4x128xi32>
    %24 = arith.cmpi sge, %22, %23 : vector<4x128xi32>
    %c6_i32 = arith.constant 6 : i32
    %25 = vector.broadcast %c6_i32 : i32 to vector<4x128xi32>
    %26 = arith.cmpi slt, %22, %25 : vector<4x128xi32>
    %27 = arith.andi %24, %26 : vector<4x128xi1>
    %c6_i32_20 = arith.constant 6 : i32
    %28 = vector.broadcast %c6_i32_20 : i32 to vector<4x128xi32>
    %29 = arith.cmpi sge, %22, %28 : vector<4x128xi32>
    %c12_i32 = arith.constant 12 : i32
    %30 = vector.broadcast %c12_i32 : i32 to vector<4x128xi32>
    %31 = arith.cmpi slt, %22, %30 : vector<4x128xi32>
    %32 = arith.andi %29, %31 : vector<4x128xi1>
    %c12_i32_21 = arith.constant 12 : i32
    %33 = vector.broadcast %c12_i32_21 : i32 to vector<4x128xi32>
    %34 = arith.cmpi sge, %22, %33 : vector<4x128xi32>
    %c18_i32 = arith.constant 18 : i32
    %35 = vector.broadcast %c18_i32 : i32 to vector<4x128xi32>
    %36 = arith.cmpi slt, %22, %35 : vector<4x128xi32>
    %37 = arith.andi %34, %36 : vector<4x128xi1>
    %c18_i32_22 = arith.constant 18 : i32
    %38 = vector.broadcast %c18_i32_22 : i32 to vector<4x128xi32>
    %39 = arith.cmpi sge, %22, %38 : vector<4x128xi32>
    %c24_i32 = arith.constant 24 : i32
    %40 = vector.broadcast %c24_i32 : i32 to vector<4x128xi32>
    %41 = arith.cmpi slt, %22, %40 : vector<4x128xi32>
    %42 = arith.andi %39, %41 : vector<4x128xi1>
    %c24_i32_23 = arith.constant 24 : i32
    %43 = vector.broadcast %c24_i32_23 : i32 to vector<4x128xi32>
    %44 = arith.cmpi sge, %22, %43 : vector<4x128xi32>
    %c30_i32 = arith.constant 30 : i32
    %45 = vector.broadcast %c30_i32 : i32 to vector<4x128xi32>
    %46 = arith.cmpi slt, %22, %45 : vector<4x128xi32>
    %47 = arith.andi %44, %46 : vector<4x128xi1>
    %c30_i32_24 = arith.constant 30 : i32
    %48 = vector.broadcast %c30_i32_24 : i32 to vector<4x128xi32>
    %49 = arith.cmpi sge, %22, %48 : vector<4x128xi32>
    %c36_i32 = arith.constant 36 : i32
    %50 = vector.broadcast %c36_i32 : i32 to vector<4x128xi32>
    %51 = arith.cmpi slt, %22, %50 : vector<4x128xi32>
    %52 = arith.andi %49, %51 : vector<4x128xi1>
    %c36_i32_25 = arith.constant 36 : i32
    %53 = vector.broadcast %c36_i32_25 : i32 to vector<4x128xi32>
    %54 = arith.cmpi sge, %22, %53 : vector<4x128xi32>
    %c42_i32 = arith.constant 42 : i32
    %55 = vector.broadcast %c42_i32 : i32 to vector<4x128xi32>
    %56 = arith.cmpi slt, %22, %55 : vector<4x128xi32>
    %57 = arith.andi %54, %56 : vector<4x128xi1>
    %c42_i32_26 = arith.constant 42 : i32
    %58 = vector.broadcast %c42_i32_26 : i32 to vector<4x128xi32>
    %59 = arith.cmpi sge, %22, %58 : vector<4x128xi32>
    %c48_i32 = arith.constant 48 : i32
    %60 = vector.broadcast %c48_i32 : i32 to vector<4x128xi32>
    %61 = arith.cmpi slt, %22, %60 : vector<4x128xi32>
    %62 = arith.andi %59, %61 : vector<4x128xi1>
    %c48_i32_27 = arith.constant 48 : i32
    %63 = vector.broadcast %c48_i32_27 : i32 to vector<4x128xi32>
    %64 = arith.cmpi sge, %22, %63 : vector<4x128xi32>
    %c54_i32 = arith.constant 54 : i32
    %65 = vector.broadcast %c54_i32 : i32 to vector<4x128xi32>
    %66 = arith.cmpi slt, %22, %65 : vector<4x128xi32>
    %67 = arith.andi %64, %66 : vector<4x128xi1>
    %c54_i32_28 = arith.constant 54 : i32
    %68 = vector.broadcast %c54_i32_28 : i32 to vector<4x128xi32>
    %69 = arith.cmpi sge, %22, %68 : vector<4x128xi32>
    %c60_i32 = arith.constant 60 : i32
    %70 = vector.broadcast %c60_i32 : i32 to vector<4x128xi32>
    %71 = arith.cmpi slt, %22, %70 : vector<4x128xi32>
    %72 = arith.andi %69, %71 : vector<4x128xi1>
    %c0_29 = arith.constant 0 : index
    %c0_30 = arith.constant 0 : index
    %73 = tpu.strided_load %arg6[%c0_29, %c0_30] {strides = array<i32: 10, 1>} : memref<40x128xf32, #tpu.memory_space<vmem>>, vector<4x128xf32>
    %c0_i32_31 = arith.constant 0 : i32
    %74 = arith.sitofp %c0_i32_31 : i32 to f32
    %75 = vector.broadcast %74 : f32 to vector<4x128xf32>
    %76 = arith.select %27, %73, %75 : vector<4x128xi1>, vector<4x128xf32>
    %c1 = arith.constant 1 : index
    %c0_32 = arith.constant 0 : index
    %77 = tpu.strided_load %arg6[%c1, %c0_32] {strides = array<i32: 10, 1>} : memref<40x128xf32, #tpu.memory_space<vmem>>, vector<4x128xf32>
    %c0_i32_33 = arith.constant 0 : i32
    %78 = arith.sitofp %c0_i32_33 : i32 to f32
    %79 = vector.broadcast %78 : f32 to vector<4x128xf32>
    %80 = arith.select %32, %77, %79 : vector<4x128xi1>, vector<4x128xf32>
    %81 = arith.addf %76, %80 : vector<4x128xf32>
    %c2_34 = arith.constant 2 : index
    %c0_35 = arith.constant 0 : index
    %82 = tpu.strided_load %arg6[%c2_34, %c0_35] {strides = array<i32: 10, 1>} : memref<40x128xf32, #tpu.memory_space<vmem>>, vector<4x128xf32>
    %c0_i32_36 = arith.constant 0 : i32
    %83 = arith.sitofp %c0_i32_36 : i32 to f32
    %84 = vector.broadcast %83 : f32 to vector<4x128xf32>
    %85 = arith.select %37, %82, %84 : vector<4x128xi1>, vector<4x128xf32>
    %86 = arith.addf %81, %85 : vector<4x128xf32>
    %c3_37 = arith.constant 3 : index
    %c0_38 = arith.constant 0 : index
    %87 = tpu.strided_load %arg6[%c3_37, %c0_38] {strides = array<i32: 10, 1>} : memref<40x128xf32, #tpu.memory_space<vmem>>, vector<4x128xf32>
    %c0_i32_39 = arith.constant 0 : i32
    %88 = arith.sitofp %c0_i32_39 : i32 to f32
    %89 = vector.broadcast %88 : f32 to vector<4x128xf32>
    %90 = arith.select %42, %87, %89 : vector<4x128xi1>, vector<4x128xf32>
    %91 = arith.addf %86, %90 : vector<4x128xf32>
    %c4 = arith.constant 4 : index
    %c0_40 = arith.constant 0 : index
    %92 = tpu.strided_load %arg6[%c4, %c0_40] {strides = array<i32: 10, 1>} : memref<40x128xf32, #tpu.memory_space<vmem>>, vector<4x128xf32>
    %c0_i32_41 = arith.constant 0 : i32
    %93 = arith.sitofp %c0_i32_41 : i32 to f32
    %94 = vector.broadcast %93 : f32 to vector<4x128xf32>
    %95 = arith.select %47, %92, %94 : vector<4x128xi1>, vector<4x128xf32>
    %96 = arith.addf %91, %95 : vector<4x128xf32>
    %c5 = arith.constant 5 : index
    %c0_42 = arith.constant 0 : index
    %97 = tpu.strided_load %arg6[%c5, %c0_42] {strides = array<i32: 10, 1>} : memref<40x128xf32, #tpu.memory_space<vmem>>, vector<4x128xf32>
    %c0_i32_43 = arith.constant 0 : i32
    %98 = arith.sitofp %c0_i32_43 : i32 to f32
    %99 = vector.broadcast %98 : f32 to vector<4x128xf32>
    %100 = arith.select %52, %97, %99 : vector<4x128xi1>, vector<4x128xf32>
    %101 = arith.addf %96, %100 : vector<4x128xf32>
    %c6 = arith.constant 6 : index
    %c0_44 = arith.constant 0 : index
    %102 = tpu.strided_load %arg6[%c6, %c0_44] {strides = array<i32: 10, 1>} : memref<40x128xf32, #tpu.memory_space<vmem>>, vector<4x128xf32>
    %c0_i32_45 = arith.constant 0 : i32
    %103 = arith.sitofp %c0_i32_45 : i32 to f32
    %104 = vector.broadcast %103 : f32 to vector<4x128xf32>
    %105 = arith.select %57, %102, %104 : vector<4x128xi1>, vector<4x128xf32>
    %106 = arith.addf %101, %105 : vector<4x128xf32>
    %c7 = arith.constant 7 : index
    %c0_46 = arith.constant 0 : index
    %107 = tpu.strided_load %arg6[%c7, %c0_46] {strides = array<i32: 10, 1>} : memref<40x128xf32, #tpu.memory_space<vmem>>, vector<4x128xf32>
    %c0_i32_47 = arith.constant 0 : i32
    %108 = arith.sitofp %c0_i32_47 : i32 to f32
    %109 = vector.broadcast %108 : f32 to vector<4x128xf32>
    %110 = arith.select %62, %107, %109 : vector<4x128xi1>, vector<4x128xf32>
    %111 = arith.addf %106, %110 : vector<4x128xf32>
    %c8 = arith.constant 8 : index
    %c0_48 = arith.constant 0 : index
    %112 = tpu.strided_load %arg6[%c8, %c0_48] {strides = array<i32: 10, 1>} : memref<40x128xf32, #tpu.memory_space<vmem>>, vector<4x128xf32>
    %c0_i32_49 = arith.constant 0 : i32
    %113 = arith.sitofp %c0_i32_49 : i32 to f32
    %114 = vector.broadcast %113 : f32 to vector<4x128xf32>
    %115 = arith.select %67, %112, %114 : vector<4x128xi1>, vector<4x128xf32>
    %116 = arith.addf %111, %115 : vector<4x128xf32>
    %c9 = arith.constant 9 : index
    %c0_50 = arith.constant 0 : index
    %117 = tpu.strided_load %arg6[%c9, %c0_50] {strides = array<i32: 10, 1>} : memref<40x128xf32, #tpu.memory_space<vmem>>, vector<4x128xf32>
    %c0_i32_51 = arith.constant 0 : i32
    %118 = arith.sitofp %c0_i32_51 : i32 to f32
    %119 = vector.broadcast %118 : f32 to vector<4x128xf32>
    %120 = arith.select %72, %117, %119 : vector<4x128xi1>, vector<4x128xf32>
    %121 = arith.addf %116, %120 : vector<4x128xf32>
    %122 = arith.truncf %121 : vector<4x128xf32> to vector<4x128xbf16>
    %123 = vector.extract_strided_slice %122 {offsets = [0, 0], sizes = [3, 128], strides = [1, 1]} : vector<4x128xbf16> to vector<3x128xbf16>
    %c1_52 = arith.constant 1 : index
    %c0_53 = arith.constant 0 : index
    %c0_54 = arith.constant 0 : index
    %124 = vector.load %arg3[%c1_52, %c0_53, %c0_54] : memref<8x128x128xbf16, #tpu.memory_space<vmem>>, vector<1x128x128xbf16>
    %125 = vector.shape_cast %124 : vector<1x128x128xbf16> to vector<128x128xbf16>
    %cst_55 = arith.constant dense<0.000000e+00> : vector<3x128xf32>
    %126 = tpu.matmul %123, %125, %cst_55 {dimension_numbers = #tpu.dot_dimension_numbers<[1], [0], [0], [1], [0, 0, 1, 1], [], []>} : vector<3x128xbf16>, vector<128x128xbf16>, vector<3x128xf32> -> vector<3x128xf32>
    %127 = vector.extract_strided_slice %122 {offsets = [1, 0], sizes = [3, 128], strides = [1, 1]} : vector<4x128xbf16> to vector<3x128xbf16>
    %c2_56 = arith.constant 2 : index
    %c0_57 = arith.constant 0 : index
    %c0_58 = arith.constant 0 : index
    %128 = vector.load %arg3[%c2_56, %c0_57, %c0_58] : memref<8x128x128xbf16, #tpu.memory_space<vmem>>, vector<1x128x128xbf16>
    %129 = vector.shape_cast %128 : vector<1x128x128xbf16> to vector<128x128xbf16>
    %cst_59 = arith.constant dense<0.000000e+00> : vector<3x128xf32>
    %130 = tpu.matmul %127, %129, %cst_59 {dimension_numbers = #tpu.dot_dimension_numbers<[1], [0], [0], [1], [0, 0, 1, 1], [], []>} : vector<3x128xbf16>, vector<128x128xbf16>, vector<3x128xf32> -> vector<3x128xf32>
    %131 = arith.addf %126, %130 : vector<3x128xf32>
    %c1_60 = arith.constant 1 : index
    %c0_61 = arith.constant 0 : index
    %132 = vector.load %arg4[%c1_60, %c0_61] : memref<8x128xf32, #tpu.memory_space<vmem>>, vector<1x128xf32>
    %133 = vector.broadcast %132 : vector<1x128xf32> to vector<3x128xf32>
    %134 = arith.addf %131, %133 : vector<3x128xf32>
    %cst_62 = arith.constant 0.000000e+00 : f32
    %135 = vector.broadcast %cst_62 : f32 to vector<3x128xf32>
    %136 = arith.maximumf %134, %135 : vector<3x128xf32>
    %137 = tpu.iota {dimensions = array<i32: 1>} : vector<17x128xi32>
    %c0_i32_63 = arith.constant 0 : i32
    %138 = vector.broadcast %c0_i32_63 : i32 to vector<17x128xi32>
    %139 = arith.cmpi sge, %137, %138 : vector<17x128xi32>
    %c2_i32 = arith.constant 2 : i32
    %140 = vector.broadcast %c2_i32 : i32 to vector<17x128xi32>
    %141 = arith.cmpi slt, %137, %140 : vector<17x128xi32>
    %142 = arith.andi %139, %141 : vector<17x128xi1>
    %c2_i32_64 = arith.constant 2 : i32
    %143 = vector.broadcast %c2_i32_64 : i32 to vector<17x128xi32>
    %144 = arith.cmpi sge, %137, %143 : vector<17x128xi32>
    %c4_i32 = arith.constant 4 : i32
    %145 = vector.broadcast %c4_i32 : i32 to vector<17x128xi32>
    %146 = arith.cmpi slt, %137, %145 : vector<17x128xi32>
    %147 = arith.andi %144, %146 : vector<17x128xi1>
    %c4_i32_65 = arith.constant 4 : i32
    %148 = vector.broadcast %c4_i32_65 : i32 to vector<17x128xi32>
    %149 = arith.cmpi sge, %137, %148 : vector<17x128xi32>
    %c6_i32_66 = arith.constant 6 : i32
    %150 = vector.broadcast %c6_i32_66 : i32 to vector<17x128xi32>
    %151 = arith.cmpi slt, %137, %150 : vector<17x128xi32>
    %152 = arith.andi %149, %151 : vector<17x128xi1>
    %c6_i32_67 = arith.constant 6 : i32
    %153 = vector.broadcast %c6_i32_67 : i32 to vector<17x128xi32>
    %154 = arith.cmpi sge, %137, %153 : vector<17x128xi32>
    %c8_i32 = arith.constant 8 : i32
    %155 = vector.broadcast %c8_i32 : i32 to vector<17x128xi32>
    %156 = arith.cmpi slt, %137, %155 : vector<17x128xi32>
    %157 = arith.andi %154, %156 : vector<17x128xi1>
    %c8_i32_68 = arith.constant 8 : i32
    %158 = vector.broadcast %c8_i32_68 : i32 to vector<17x128xi32>
    %159 = arith.cmpi sge, %137, %158 : vector<17x128xi32>
    %c10_i32 = arith.constant 10 : i32
    %160 = vector.broadcast %c10_i32 : i32 to vector<17x128xi32>
    %161 = arith.cmpi slt, %137, %160 : vector<17x128xi32>
    %162 = arith.andi %159, %161 : vector<17x128xi1>
    %c0_69 = arith.constant 0 : index
    %c0_70 = arith.constant 0 : index
    %163 = tpu.strided_load %arg7[%c0_69, %c0_70] {strides = array<i32: 5, 1>} : memref<88x128xf32, #tpu.memory_space<vmem>>, vector<17x128xf32>
    %c0_i32_71 = arith.constant 0 : i32
    %164 = arith.sitofp %c0_i32_71 : i32 to f32
    %165 = vector.broadcast %164 : f32 to vector<17x128xf32>
    %166 = arith.select %142, %163, %165 : vector<17x128xi1>, vector<17x128xf32>
    %c1_72 = arith.constant 1 : index
    %c0_73 = arith.constant 0 : index
    %167 = tpu.strided_load %arg7[%c1_72, %c0_73] {strides = array<i32: 5, 1>} : memref<88x128xf32, #tpu.memory_space<vmem>>, vector<17x128xf32>
    %c0_i32_74 = arith.constant 0 : i32
    %168 = arith.sitofp %c0_i32_74 : i32 to f32
    %169 = vector.broadcast %168 : f32 to vector<17x128xf32>
    %170 = arith.select %147, %167, %169 : vector<17x128xi1>, vector<17x128xf32>
    %171 = arith.addf %166, %170 : vector<17x128xf32>
    %c2_75 = arith.constant 2 : index
    %c0_76 = arith.constant 0 : index
    %172 = tpu.strided_load %arg7[%c2_75, %c0_76] {strides = array<i32: 5, 1>} : memref<88x128xf32, #tpu.memory_space<vmem>>, vector<17x128xf32>
    %c0_i32_77 = arith.constant 0 : i32
    %173 = arith.sitofp %c0_i32_77 : i32 to f32
    %174 = vector.broadcast %173 : f32 to vector<17x128xf32>
    %175 = arith.select %152, %172, %174 : vector<17x128xi1>, vector<17x128xf32>
    %176 = arith.addf %171, %175 : vector<17x128xf32>
    %c3_78 = arith.constant 3 : index
    %c0_79 = arith.constant 0 : index
    %177 = tpu.strided_load %arg7[%c3_78, %c0_79] {strides = array<i32: 5, 1>} : memref<88x128xf32, #tpu.memory_space<vmem>>, vector<17x128xf32>
    %c0_i32_80 = arith.constant 0 : i32
    %178 = arith.sitofp %c0_i32_80 : i32 to f32
    %179 = vector.broadcast %178 : f32 to vector<17x128xf32>
    %180 = arith.select %157, %177, %179 : vector<17x128xi1>, vector<17x128xf32>
    %181 = arith.addf %176, %180 : vector<17x128xf32>
    %c4_81 = arith.constant 4 : index
    %c0_82 = arith.constant 0 : index
    %182 = tpu.strided_load %arg7[%c4_81, %c0_82] {strides = array<i32: 5, 1>} : memref<88x128xf32, #tpu.memory_space<vmem>>, vector<17x128xf32>
    %c0_i32_83 = arith.constant 0 : i32
    %183 = arith.sitofp %c0_i32_83 : i32 to f32
    %184 = vector.broadcast %183 : f32 to vector<17x128xf32>
    %185 = arith.select %162, %182, %184 : vector<17x128xi1>, vector<17x128xf32>
    %186 = arith.addf %181, %185 : vector<17x128xf32>
    %187 = arith.truncf %186 : vector<17x128xf32> to vector<17x128xbf16>
    %188 = vector.extract_strided_slice %187 {offsets = [0, 0], sizes = [16, 128], strides = [1, 1]} : vector<17x128xbf16> to vector<16x128xbf16>
    %c4_84 = arith.constant 4 : index
    %c0_85 = arith.constant 0 : index
    %c0_86 = arith.constant 0 : index
    %189 = vector.load %arg3[%c4_84, %c0_85, %c0_86] : memref<8x128x128xbf16, #tpu.memory_space<vmem>>, vector<1x128x128xbf16>
    %190 = vector.shape_cast %189 : vector<1x128x128xbf16> to vector<128x128xbf16>
    %cst_87 = arith.constant dense<0.000000e+00> : vector<16x128xf32>
    %191 = tpu.matmul %188, %190, %cst_87 {dimension_numbers = #tpu.dot_dimension_numbers<[1], [0], [0], [1], [0, 0, 1, 1], [], []>} : vector<16x128xbf16>, vector<128x128xbf16>, vector<16x128xf32> -> vector<16x128xf32>
    %192 = vector.extract_strided_slice %187 {offsets = [1, 0], sizes = [16, 128], strides = [1, 1]} : vector<17x128xbf16> to vector<16x128xbf16>
    %c5_88 = arith.constant 5 : index
    %c0_89 = arith.constant 0 : index
    %c0_90 = arith.constant 0 : index
    %193 = vector.load %arg3[%c5_88, %c0_89, %c0_90] : memref<8x128x128xbf16, #tpu.memory_space<vmem>>, vector<1x128x128xbf16>
    %194 = vector.shape_cast %193 : vector<1x128x128xbf16> to vector<128x128xbf16>
    %cst_91 = arith.constant dense<0.000000e+00> : vector<16x128xf32>
    %195 = tpu.matmul %192, %194, %cst_91 {dimension_numbers = #tpu.dot_dimension_numbers<[1], [0], [0], [1], [0, 0, 1, 1], [], []>} : vector<16x128xbf16>, vector<128x128xbf16>, vector<16x128xf32> -> vector<16x128xf32>
    %196 = arith.addf %191, %195 : vector<16x128xf32>
    %c3_92 = arith.constant 3 : index
    %c0_93 = arith.constant 0 : index
    %197 = vector.load %arg4[%c3_92, %c0_93] : memref<8x128xf32, #tpu.memory_space<vmem>>, vector<1x128xf32>
    %198 = vector.broadcast %197 : vector<1x128xf32> to vector<16x128xf32>
    %199 = arith.addf %196, %198 : vector<16x128xf32>
    %cst_94 = arith.constant 0.000000e+00 : f32
    %200 = vector.broadcast %cst_94 : f32 to vector<16x128xf32>
    %201 = arith.maximumf %199, %200 : vector<16x128xf32>
    %c0_95 = arith.constant 0 : index
    %c0_96 = arith.constant 0 : index
    %202 = vector.load %arg8[%c0_95, %c0_96] : memref<16x128xf32, #tpu.memory_space<vmem>>, vector<16x128xf32>
    tpu.vector_store %arg8[%c0_95, %c0_96], %201 {strides = array<i32>} : memref<16x128xf32, #tpu.memory_space<vmem>>, vector<16x128xf32>,
    %203 = tpu.iota {dimensions = array<i32: 1>} : vector<4x128xi32>
    %c0_i32_97 = arith.constant 0 : i32
    %204 = vector.broadcast %c0_i32_97 : i32 to vector<4x128xi32>
    %205 = arith.cmpi sge, %203, %204 : vector<4x128xi32>
    %c2_i32_98 = arith.constant 2 : i32
    %206 = vector.broadcast %c2_i32_98 : i32 to vector<4x128xi32>
    %207 = arith.cmpi slt, %203, %206 : vector<4x128xi32>
    %208 = arith.andi %205, %207 : vector<4x128xi1>
    %c2_i32_99 = arith.constant 2 : i32
    %209 = vector.broadcast %c2_i32_99 : i32 to vector<4x128xi32>
    %210 = arith.cmpi sge, %203, %209 : vector<4x128xi32>
    %c4_i32_100 = arith.constant 4 : i32
    %211 = vector.broadcast %c4_i32_100 : i32 to vector<4x128xi32>
    %212 = arith.cmpi slt, %203, %211 : vector<4x128xi32>
    %213 = arith.andi %210, %212 : vector<4x128xi1>
    %c4_i32_101 = arith.constant 4 : i32
    %214 = vector.broadcast %c4_i32_101 : i32 to vector<4x128xi32>
    %215 = arith.cmpi sge, %203, %214 : vector<4x128xi32>
    %c6_i32_102 = arith.constant 6 : i32
    %216 = vector.broadcast %c6_i32_102 : i32 to vector<4x128xi32>
    %217 = arith.cmpi slt, %203, %216 : vector<4x128xi32>
    %218 = arith.andi %215, %217 : vector<4x128xi1>
    %c6_i32_103 = arith.constant 6 : i32
    %219 = vector.broadcast %c6_i32_103 : i32 to vector<4x128xi32>
    %220 = arith.cmpi sge, %203, %219 : vector<4x128xi32>
    %c8_i32_104 = arith.constant 8 : i32
    %221 = vector.broadcast %c8_i32_104 : i32 to vector<4x128xi32>
    %222 = arith.cmpi slt, %203, %221 : vector<4x128xi32>
    %223 = arith.andi %220, %222 : vector<4x128xi1>
    %c0_105 = arith.constant 0 : index
    %c0_106 = arith.constant 0 : index
    %224 = tpu.strided_load %arg8[%c0_105, %c0_106] {strides = array<i32: 4, 1>} : memref<16x128xf32, #tpu.memory_space<vmem>>, vector<4x128xf32>
    %c0_i32_107 = arith.constant 0 : i32
    %225 = arith.sitofp %c0_i32_107 : i32 to f32
    %226 = vector.broadcast %225 : f32 to vector<4x128xf32>
    %227 = arith.select %208, %224, %226 : vector<4x128xi1>, vector<4x128xf32>
    %c1_108 = arith.constant 1 : index
    %c0_109 = arith.constant 0 : index
    %228 = tpu.strided_load %arg8[%c1_108, %c0_109] {strides = array<i32: 4, 1>} : memref<16x128xf32, #tpu.memory_space<vmem>>, vector<4x128xf32>
    %c0_i32_110 = arith.constant 0 : i32
    %229 = arith.sitofp %c0_i32_110 : i32 to f32
    %230 = vector.broadcast %229 : f32 to vector<4x128xf32>
    %231 = arith.select %213, %228, %230 : vector<4x128xi1>, vector<4x128xf32>
    %232 = arith.addf %227, %231 : vector<4x128xf32>
    %c2_111 = arith.constant 2 : index
    %c0_112 = arith.constant 0 : index
    %233 = tpu.strided_load %arg8[%c2_111, %c0_112] {strides = array<i32: 4, 1>} : memref<16x128xf32, #tpu.memory_space<vmem>>, vector<4x128xf32>
    %c0_i32_113 = arith.constant 0 : i32
    %234 = arith.sitofp %c0_i32_113 : i32 to f32
    %235 = vector.broadcast %234 : f32 to vector<4x128xf32>
    %236 = arith.select %218, %233, %235 : vector<4x128xi1>, vector<4x128xf32>
    %237 = arith.addf %232, %236 : vector<4x128xf32>
    %c3_114 = arith.constant 3 : index
    %c0_115 = arith.constant 0 : index
    %238 = tpu.strided_load %arg8[%c3_114, %c0_115] {strides = array<i32: 4, 1>} : memref<16x128xf32, #tpu.memory_space<vmem>>, vector<4x128xf32>
    %c0_i32_116 = arith.constant 0 : i32
    %239 = arith.sitofp %c0_i32_116 : i32 to f32
    %240 = vector.broadcast %239 : f32 to vector<4x128xf32>
    %241 = arith.select %223, %238, %240 : vector<4x128xi1>, vector<4x128xf32>
    %242 = arith.addf %237, %241 : vector<4x128xf32>
    %243 = arith.truncf %242 : vector<4x128xf32> to vector<4x128xbf16>
    %244 = vector.extract_strided_slice %243 {offsets = [0, 0], sizes = [3, 128], strides = [1, 1]} : vector<4x128xbf16> to vector<3x128xbf16>
    %c6_117 = arith.constant 6 : index
    %c0_118 = arith.constant 0 : index
    %c0_119 = arith.constant 0 : index
    %245 = vector.load %arg3[%c6_117, %c0_118, %c0_119] : memref<8x128x128xbf16, #tpu.memory_space<vmem>>, vector<1x128x128xbf16>
    %246 = vector.shape_cast %245 : vector<1x128x128xbf16> to vector<128x128xbf16>
    %cst_120 = arith.constant dense<0.000000e+00> : vector<3x128xf32>
    %247 = tpu.matmul %244, %246, %cst_120 {dimension_numbers = #tpu.dot_dimension_numbers<[1], [0], [0], [1], [0, 0, 1, 1], [], []>} : vector<3x128xbf16>, vector<128x128xbf16>, vector<3x128xf32> -> vector<3x128xf32>
    %248 = vector.extract_strided_slice %243 {offsets = [1, 0], sizes = [3, 128], strides = [1, 1]} : vector<4x128xbf16> to vector<3x128xbf16>
    %c7_121 = arith.constant 7 : index
    %c0_122 = arith.constant 0 : index
    %c0_123 = arith.constant 0 : index
    %249 = vector.load %arg3[%c7_121, %c0_122, %c0_123] : memref<8x128x128xbf16, #tpu.memory_space<vmem>>, vector<1x128x128xbf16>
    %250 = vector.shape_cast %249 : vector<1x128x128xbf16> to vector<128x128xbf16>
    %cst_124 = arith.constant dense<0.000000e+00> : vector<3x128xf32>
    %251 = tpu.matmul %248, %250, %cst_124 {dimension_numbers = #tpu.dot_dimension_numbers<[1], [0], [0], [1], [0, 0, 1, 1], [], []>} : vector<3x128xbf16>, vector<128x128xbf16>, vector<3x128xf32> -> vector<3x128xf32>
    %252 = arith.addf %247, %251 : vector<3x128xf32>
    %c4_125 = arith.constant 4 : index
    %c0_126 = arith.constant 0 : index
    %253 = vector.load %arg4[%c4_125, %c0_126] : memref<8x128xf32, #tpu.memory_space<vmem>>, vector<1x128xf32>
    %254 = vector.broadcast %253 : vector<1x128xf32> to vector<3x128xf32>
    %255 = arith.addf %252, %254 : vector<3x128xf32>
    %cst_127 = arith.constant 0.000000e+00 : f32
    %256 = vector.broadcast %cst_127 : f32 to vector<3x128xf32>
    %257 = arith.maximumf %255, %256 : vector<3x128xf32>
    %258 = arith.addf %136, %257 : vector<3x128xf32>
    %c0_128 = arith.constant 0 : index
    %c0_129 = arith.constant 0 : index
    %c0_130 = arith.constant 0 : index
    %259 = vector.load %arg5[%c0_128, %c0_129, %c0_130] : memref<1x3x128xf32, #tpu.memory_space<vmem>>, vector<1x3x128xf32>
    %260 = vector.shape_cast %259 : vector<1x3x128xf32> to vector<3x128xf32>
    %261 = vector.shape_cast %258 : vector<3x128xf32> to vector<1x3x128xf32>
    tpu.vector_store %arg5[%c0_128, %c0_129, %c0_130], %261 {strides = array<i32>} : memref<1x3x128xf32, #tpu.memory_space<vmem>>, vector<1x3x128xf32>,
    return
  }
  func.func @transform_0(%arg0: i32) -> (i32, i32, i32) {
    %c0_i32 = arith.constant 0 : i32
    %c0_i32_0 = arith.constant 0 : i32
    %c0_i32_1 = arith.constant 0 : i32
    return %arg0, %c0_i32, %c0_i32_0 : i32, i32, i32
  }
  func.func @transform_1(%arg0: i32) -> (i32, i32, i32) {
    %c0_i32 = arith.constant 0 : i32
    %c0_i32_0 = arith.constant 0 : i32
    %c0_i32_1 = arith.constant 0 : i32
    return %arg0, %c0_i32, %c0_i32_0 : i32, i32, i32
  }
  func.func @transform_2(%arg0: i32) -> (i32, i32, i32) {
    %c0_i32 = arith.constant 0 : i32
    %c0_i32_0 = arith.constant 0 : i32
    %c0_i32_1 = arith.constant 0 : i32
    %c0_i32_2 = arith.constant 0 : i32
    return %c0_i32, %c0_i32_0, %c0_i32_1 : i32, i32, i32
  }
  func.func @transform_3(%arg0: i32) -> (i32, i32) {
    %c0_i32 = arith.constant 0 : i32
    %c0_i32_0 = arith.constant 0 : i32
    %c0_i32_1 = arith.constant 0 : i32
    return %c0_i32, %c0_i32_0 : i32, i32
  }
  func.func @transform_4(%arg0: i32) -> (i32, i32, i32) {
    %c0_i32 = arith.constant 0 : i32
    %c0_i32_0 = arith.constant 0 : i32
    %c0_i32_1 = arith.constant 0 : i32
    return %arg0, %c0_i32, %c0_i32_0 : i32, i32, i32
  }
}

</mosaic_0001>

<llo_original>
// kernel: multipath_forward.1
$region0: #{multipath_forward.1}
  #allocation0 [shape = 'u32[]', space=smem, size = 0x4, offset = 0x4, fixed_abs, tag = 'smem constant byte address 0x4 - core index']
  #allocation1 [shape = 'u32[72,128]{1,0:T(1,128)}', space=vmem, size = 0x9000, scoped, tag = 'internal scratch']
  #allocation2 [shape = 'f32[40,128]{1,0:T(8,128)}', space=vmem, size = 0x5000, scoped, tag = 'scratch operand']
  #allocation3 [shape = 'f32[88,128]{1,0:T(8,128)}', space=vmem, size = 0xb000, scoped, tag = 'scratch operand']
  #allocation4 [shape = 'f32[16,128]{1,0:T(8,128)}', space=vmem, size = 0x2000, scoped, tag = 'scratch operand']
  %s0 = inlined_call_operand.vmem [shape: bf16[2,40,128], index: 0, kind: input, shape index: {}]
  %s1 = inlined_call_operand.vmem [shape: bf16[2,88,128], index: 1, kind: input, shape index: {}]
  %s2 = inlined_call_operand.vmem [shape: bf16[8,128,128], index: 2, kind: input, shape index: {}]
  %s3 = inlined_call_operand.vmem [shape: f32[8,128], index: 3, kind: input, shape index: {}]
  %s4 = inlined_call_operand.vmem [shape: f32[2,3,128], index: 4, kind: output, shape index: {}]
  %s5 = sld [smem:[#allocation0]]
  $region49: #{multipath_forward.1} parent=0
    _
  %s7 = ssub.s32 1, %s5
  %s8 = scalar_select 0, %s7, %s5
  loop: start=0, step=1, limit=4
  $region2: #{multipath_forward.1} parent=0 // loop_pre_header
    _
  $region3: #{multipath_forward.1} parent=0 // loop_header
    %s10 = sphi 0, %s14
    %p11 = scmp.ge.s32.totalorder %s10, 4
    %s20 = sphi 0, %s22
    %s23 = sphi 0, %s20
    %s24 = sphi 0, %s23
    %s40 = sphi 0, %s24
    %s46 = sphi 0, %s48
    %s49 = sphi 0, %s46
    %s50 = sphi 0, %s49
    %s66 = sphi 0, %s50
    %s70 = sphi 0, %s70
    %s72 = sphi 0, %s70
    %s73 = sphi 0, %s72
    %s87 = sphi 0, %s73
    %s91 = sphi 0, %s91
    %s93 = sphi 0, %s91
    %s94 = sphi 0, %s93
    %s108 = sphi 0, %s94
    %s114 = sphi 0, %s116
    %s117 = sphi 0, %s114
    %s118 = sphi 0, %s117
    %s134 = sphi 0, %s118
  $region4: #{multipath_forward.1} parent=0 // loop_header_branch
    %13 = sbr.rel (%p11) target = $region8
  $region5: #{multipath_forward.1} parent=0 // loop_body
    %s15 = ssub.s32 %s10, 1
    %s16 = ssub.s32 %s10, 2
    %s17 = sadd.s32 %s10, 1
    %s18 = ssub.s32 %s10, %s17
    %p19 = scmp.eq.s32.totalorder %s18, 0
    %s21 = sadd.s32 %s20, 1
    %s22 = scalar_select %p19, %s20, %s21
    %p25 = pneg %p19
    %p26 = scmp.eq.s32.totalorder %s10, 1
    %p27 = por %p25, %p26
    %p28 = scmp.ne.s32.totalorder %s20, %s23
    %p29 = scmp.eq.s32.totalorder %s10, 0
    %p30 = por %p28, %p29
    %p31 = scmp.ne.s32.totalorder %s20, %s23
    %p32 = scmp.eq.s32.totalorder %s15, 1
    %p33 = por %p31, %p32
    %p34 = scmp.ne.s32.totalorder %s23, %s24
    %p35 = scmp.eq.s32.totalorder %s15, 0
    %p36 = por %p34, %p35
    %p37 = scmp.ne.s32.totalorder %s23, %s24
    %p38 = scmp.eq.s32.totalorder %s16, 1
    %p39 = por %p37, %p38
    %p41 = scmp.ne.s32.totalorder %s24, %s40
    %p42 = scmp.eq.s32.totalorder %s16, 0
    %p43 = por %p41, %p42
    %s44 = ssub.s32 %s10, %s17
    %p45 = scmp.eq.s32.totalorder %s44, 0
    %s47 = sadd.s32 %s46, 1
    %s48 = scalar_select %p45, %s46, %s47
    %p51 = pneg %p45
    %p52 = scmp.eq.s32.totalorder %s10, 1
    %p53 = por %p51, %p52
    %p54 = scmp.ne.s32.totalorder %s46, %s49
    %p55 = scmp.eq.s32.totalorder %s10, 0
    %p56 = por %p54, %p55
    %p57 = scmp.ne.s32.totalorder %s46, %s49
    %p58 = scmp.eq.s32.totalorder %s15, 1
    %p59 = por %p57, %p58
    %p60 = scmp.ne.s32.totalorder %s49, %s50
    %p61 = scmp.eq.s32.totalorder %s15, 0
    %p62 = por %p60, %p61
    %p63 = scmp.ne.s32.totalorder %s49, %s50
    %p64 = scmp.eq.s32.totalorder %s16, 1
    %p65 = por %p63, %p64
    %p67 = scmp.ne.s32.totalorder %s50, %s66
    %p68 = scmp.eq.s32.totalorder %s16, 0
    %p69 = por %p67, %p68
    %s71 = sadd.s32 %s70, 1
    %p74 = scmp.eq.s32.totalorder %s10, 1
    %p75 = scmp.ne.s32.totalorder %s70, %s72
    %p76 = scmp.eq.s32.totalorder %s10, 0
    %p77 = por %p75, %p76
    %p78 = scmp.ne.s32.totalorder %s70, %s72
    %p79 = scmp.eq.s32.totalorder %s15, 1
    %p80 = por %p78, %p79
    %p81 = scmp.ne.s32.totalorder %s72, %s73
    %p82 = scmp.eq.s32.totalorder %s15, 0
    %p83 = por %p81, %p82
    %p84 = scmp.ne.s32.totalorder %s72, %s73
    %p85 = scmp.eq.s32.totalorder %s16, 1
    %p86 = por %p84, %p85
    %p88 = scmp.ne.s32.totalorder %s73, %s87
    %p89 = scmp.eq.s32.totalorder %s16, 0
    %p90 = por %p88, %p89
    %s92 = sadd.s32 %s91, 1
    %p95 = scmp.eq.s32.totalorder %s10, 1
    %p96 = scmp.ne.s32.totalorder %s91, %s93
    %p97 = scmp.eq.s32.totalorder %s10, 0
    %p98 = por %p96, %p97
    %p99 = scmp.ne.s32.totalorder %s91, %s93
    %p100 = scmp.eq.s32.totalorder %s15, 1
    %p101 = por %p99, %p100
    %p102 = scmp.ne.s32.totalorder %s93, %s94
    %p103 = scmp.eq.s32.totalorder %s15, 0
    %p104 = por %p102, %p103
    %p105 = scmp.ne.s32.totalorder %s93, %s94
    %p106 = scmp.eq.s32.totalorder %s16, 1
    %p107 = por %p105, %p106
    %p109 = scmp.ne.s32.totalorder %s94, %s108
    %p110 = scmp.eq.s32.totalorder %s16, 0
    %p111 = por %p109, %p110
    %s112 = ssub.s32 %s10, %s17
    %p113 = scmp.eq.s32.totalorder %s112, 0
    %s115 = sadd.s32 %s114, 1
    %s116 = scalar_select %p113, %s114, %s115
    %p119 = pneg %p113
    %p120 = scmp.eq.s32.totalorder %s10, 1
    %p121 = por %p119, %p120
    %p122 = scmp.ne.s32.totalorder %s114, %s117
    %p123 = scmp.eq.s32.totalorder %s10, 0
    %p124 = por %p122, %p123
    %p125 = scmp.ne.s32.totalorder %s114, %s117
    %p126 = scmp.eq.s32.totalorder %s15, 1
    %p127 = por %p125, %p126
    %p128 = scmp.ne.s32.totalorder %s117, %s118
    %p129 = scmp.eq.s32.totalorder %s15, 0
    %p130 = por %p128, %p129
    %p131 = scmp.ne.s32.totalorder %s117, %s118
    %p132 = scmp.eq.s32.totalorder %s16, 1
    %p133 = por %p131, %p132
    %p135 = scmp.ne.s32.totalorder %s118, %s134
    %p136 = scmp.eq.s32.totalorder %s16, 0
    %p137 = por %p135, %p136
    %p138 = scmp.le.s32.totalorder 1, %s10
    %p139 = scmp.lt.s32.totalorder %s10, 3
    %p140 = pnand %p138, %p139
    %p141 = pneg %p140
    // Predicated region
    $region9: #{multipath_forward.1} parent=5 // pred_check
      _
    $region10: #{multipath_forward.1} parent=5 // pred_check_branch
      %143 = sbr.rel (%p140) target = $region12
    $region11: #{multipath_forward.1} parent=5 // pred_region
      %s144 = ssub.s32 %s10, 1
      // Predicated region
      $region13: #{multipath_forward.1} parent=11 // pred_check
        %p145 = pneg %p83
      $region14: #{multipath_forward.1} parent=11 // pred_check_branch
        %147 = sbr.rel (%p145) target = $region16
      $region15: #{multipath_forward.1} parent=11 // pred_region
        _
      $region16: #{multipath_forward.1} parent=11 // pred_fallthru
        _
      // Predicated region
      $region17: #{multipath_forward.1} parent=11 // pred_check
        %p148 = pneg %p104
      $region18: #{multipath_forward.1} parent=11 // pred_check_branch
        %150 = sbr.rel (%p148) target = $region20
      $region19: #{multipath_forward.1} parent=11 // pred_region
        _
      $region20: #{multipath_forward.1} parent=11 // pred_fallthru
        _
    $region12: #{multipath_forward.1} parent=5 // pred_fallthru
      _
    %p151 = scmp.lt.s32.totalorder %s10, 2
    // Predicated region
    $region21: #{multipath_forward.1} parent=5 // pred_check
      %p152 = pneg %p151
    $region22: #{multipath_forward.1} parent=5 // pred_check_branch
      %154 = sbr.rel (%p152) target = $region24
    $region23: #{multipath_forward.1} parent=5 // pred_region
      // Predicated region
      $region25: #{multipath_forward.1} parent=23 // pred_check
        %p155 = pneg %p30
      $region26: #{multipath_forward.1} parent=23 // pred_check_branch
        %157 = sbr.rel (%p155) target = $region28
      $region27: #{multipath_forward.1} parent=23 // pred_region
        %p158 = scmp.lt.s32.totalorder %s10, 1
        %s159 = scalar_select %p158, %s10, 1
        %s160 = smul.addr %s159, 5
        %s161 = smul.addr %s160, 4
        %s162 = scalar_lea.vmem %s0, %s161
      $region28: #{multipath_forward.1} parent=23 // pred_fallthru
        _
      // Predicated region
      $region29: #{multipath_forward.1} parent=23 // pred_check
        %p163 = pneg %p56
      $region30: #{multipath_forward.1} parent=23 // pred_check_branch
        %165 = sbr.rel (%p163) target = $region32
      $region31: #{multipath_forward.1} parent=23 // pred_region
        %p166 = scmp.lt.s32.totalorder %s10, 1
        %s167 = scalar_select %p166, %s10, 1
        %s168 = smul.addr %s167, 11
        %s169 = smul.addr %s168, 4
        %s170 = scalar_lea.vmem %s1, %s169
      $region32: #{multipath_forward.1} parent=23 // pred_fallthru
        _
    $region24: #{multipath_forward.1} parent=5 // pred_fallthru
      _
    %p171 = scmp.le.s32.totalorder 1, %s10
    %p172 = scmp.lt.s32.totalorder %s10, 3
    %p173 = pnand %p171, %p172
    %p174 = pneg %p173
    // Predicated region
    $region33: #{multipath_forward.1} parent=5 // pred_check
      _
    $region34: #{multipath_forward.1} parent=5 // pred_check_branch
      %176 = sbr.rel (%p173) target = $region36
    $region35: #{multipath_forward.1} parent=5 // pred_region
      %s177 = ssub.s32 %s10, 1
      %p178 = scmp.lt.s32.totalorder %s15, 1
      %s179 = scalar_select %p178, %s15, 1
      %s180 = smul.addr %s179, 5
      %s181 = smul.addr %s180, 4
      %s182 = scalar_lea.vmem %s0, %s181
      %p183 = pneg %p36
      %p184 = pneg %p33
      %p185 = scmp.lt.s32.totalorder %s15, 1
      %s186 = scalar_select %p185, %s15, 1
      %s187 = smul.addr %s186, 11
      %s188 = smul.addr %s187, 4
      %s189 = scalar_lea.vmem %s1, %s188
      %p190 = pneg %p62
      %p191 = pneg %p59
      %p192 = pneg %p83
      %p193 = pneg %p80
      %p194 = pneg %p104
      %p195 = pneg %p101
      %p196 = pneg %p130
      %p197 = pneg %p127
      %p198 = scmp.lt.s32.totalorder %s15, 1
      %s199 = scalar_select %p198, %s15, 1
      %s200 = smul.addr %s199, 4
      %s201 = scalar_lea.vmem %s4, %s200
      %p202 = scmp.lt.s32.totalorder %s15, 1
      %s203 = scalar_select %p202, %s15, 1
      %s204 = smul.addr %s203, 5
      %s205 = smul.addr %s204, 4
      %s206 = scalar_lea.vmem %s0, %s205
      %p207 = scmp.lt.s32.totalorder %s15, 1
      %s208 = scalar_select %p207, %s15, 1
      %s209 = smul.addr %s208, 11
      %s210 = smul.addr %s209, 4
      %s211 = scalar_lea.vmem %s1, %s210
      %p212 = scmp.lt.s32.totalorder %s15, 1
      %s213 = scalar_select %p212, %s15, 1
      %s214 = smul.addr %s213, 4
      %s215 = scalar_lea.vmem %s4, %s214
      %v216 = vld [vmem:[%s206] sm:$0xf]
      %v217 = vld [vmem:[%s206 + $0x4] sm:$0xf]
      %v218 = vld [vmem:[%s206 + $0x8] sm:$0xf]
      %v219 = vld [vmem:[%s206 + $0xc] sm:$0xf]
      %v220 = vld [vmem:[%s206 + $0x10] sm:$0xf]
      %v221 = vld [vmem:[%s2] sm:$0xf]
      %v222 = vld [vmem:[%s2 + $0x4] sm:$0xf]
      %v223 = vld [vmem:[%s2 + $0x8] sm:$0xf]
      %v224 = vld [vmem:[%s2 + $0xc] sm:$0xf]
      %v225 = vld [vmem:[%s2 + $0x10] sm:$0xf]
      %v226 = vld [vmem:[%s2 + $0x14] sm:$0xf]
      %v227 = vld [vmem:[%s2 + $0x18] sm:$0xf]
      %v228 = vld [vmem:[%s2 + $0x1c] sm:$0xf]
      %v229 = vld [vmem:[%s2 + $0x20] sm:$0xf]
      %v230 = vld [vmem:[%s2 + $0x24] sm:$0xf]
      %v231 = vld [vmem:[%s2 + $0x28] sm:$0xf]
      %v232 = vld [vmem:[%s2 + $0x2c] sm:$0xf]
      %v233 = vld [vmem:[%s2 + $0x30] sm:$0xf]
      %v234 = vld [vmem:[%s2 + $0x34] sm:$0xf]
      %v235 = vld [vmem:[%s2 + $0x38] sm:$0xf]
      %v236 = vld [vmem:[%s2 + $0x3c] sm:$0xf]
      %v237 = vld [vmem:[%s3] sm:$0x1]
      %v238 = vperm.slane %v237, 0
      %v244 = vunpack.c.l.b16 %v216
      %v245 = vunpack.c.l.b16 %v217
      %v246 = vunpack.c.l.b16 %v218
      %v247 = vunpack.c.l.b16 %v219
      %v248 = vunpack.c.l.b16 %v220
      %v249 = vpack.c.b16 %v245, %v244
      %v250 = vpack.c.b16 %v247, %v246
      %v251 = vpack.c.b16 %v248, %v248
      %v271 = vunpack.c.l.b16 %v221
      %v272 = vunpack.c.l.b16 %v222
      %v273 = vunpack.c.l.b16 %v223
      %v274 = vunpack.c.l.b16 %v224
      %v275 = vunpack.c.l.b16 %v225
      %v276 = vunpack.c.l.b16 %v226
      %v277 = vunpack.c.l.b16 %v227
      %v278 = vunpack.c.l.b16 %v228
      %v279 = vunpack.c.l.b16 %v229
      %v280 = vunpack.c.l.b16 %v230
      %v281 = vunpack.c.l.b16 %v231
      %v282 = vunpack.c.l.b16 %v232
      %v283 = vunpack.c.l.b16 %v233
      %v284 = vunpack.c.l.b16 %v234
      %v285 = vunpack.c.l.b16 %v235
      %v286 = vunpack.c.l.b16 %v236
      %v287 = vpack.c.b16 %v272, %v271
      %v288 = vpack.c.b16 %v274, %v273
      %v289 = vpack.c.b16 %v276, %v275
      %v290 = vpack.c.b16 %v278, %v277
      %v291 = vpack.c.b16 %v280, %v279
      %v292 = vpack.c.b16 %v282, %v281
      %v293 = vpack.c.b16 %v284, %v283
      %v294 = vpack.c.b16 %v286, %v285
      %303 = vmatpush.bf16.msra.mxu0 %v294
      %304 = vmatpush.bf16.msra.mxu0 %v293
      %305 = vmatpush.bf16.msra.mxu0 %v292
      %306 = vmatpush.bf16.msra.mxu0 %v291
      %307 = vmatpush.bf16.msra.mxu0 %v290
      %308 = vmatpush.bf16.msra.mxu0 %v289
      %309 = vmatpush.bf16.msra.mxu0 %v288
      %310 = vmatpush.bf16.msra.mxu0 %v287
      %311 = vmatmul.bf16.gmra.mxu0 %v249
      %v312 = vpop.f32.mrf.mxu0
      %v313 = vadd.f32 %v238, %v312
      %v314 = vpop.f32.mrf.mxu0
      %v315 = vadd.f32 %v238, %v314
      %316 = vmatmul.bf16.gmra.mxu0 %v250
      %v317 = vpop.f32.mrf.mxu0
      %v318 = vadd.f32 %v238, %v317
      %v319 = vpop.f32.mrf.mxu0
      %v320 = vadd.f32 %v238, %v319
      %321 = vmatmul.bf16.gmra.mxu0 %v251
      %v322 = vpop.f32.mrf.mxu0
      %v323 = vadd.f32 %v238, %v322
      %v324 = vpop.f32.mrf.mxu0
      %325 = vdwg.mxu0
      %v326 = vmax.f32 %v313, 0.0
      %v327 = vmax.f32 %v315, 0.0
      %v328 = vmax.f32 %v318, 0.0
      %v329 = vmax.f32 %v320, 0.0
      %v330 = vmax.f32 %v323, 0.0
      %331 = vst [vmem:[#allocation2] sm:$0xff] %v326
      %332 = vst [vmem:[#allocation2 + $0x8] sm:$0xff] %v327
      %333 = vst [vmem:[#allocation2 + $0x10] sm:$0xff] %v328
      %334 = vst [vmem:[#allocation2 + $0x18] sm:$0xff] %v329
      %335 = vst [vmem:[#allocation2 + $0x20] sm:$0xff] %v330
      %v336 = vld [vmem:[%s211] sm:$0xf]
      %v337 = vld [vmem:[%s211 + $0x4] sm:$0xf]
      %v338 = vld [vmem:[%s211 + $0x8] sm:$0xf]
      %v339 = vld [vmem:[%s211 + $0xc] sm:$0xf]
      %v340 = vld [vmem:[%s211 + $0x10] sm:$0xf]
      %v341 = vld [vmem:[%s211 + $0x14] sm:$0xf]
      %v342 = vld [vmem:[%s211 + $0x18] sm:$0xf]
      %v343 = vld [vmem:[%s211 + $0x1c] sm:$0xf]
      %v344 = vld [vmem:[%s211 + $0x20] sm:$0xf]
      %v345 = vld [vmem:[%s211 + $0x24] sm:$0xf]
      %v346 = vld [vmem:[%s211 + $0x28] sm:$0xf]
      %s347 = scalar_lea.vmem %s2, 192
      %v348 = vld [vmem:[%s347] sm:$0xf]
      %v349 = vld [vmem:[%s347 + $0x4] sm:$0xf]
      %v350 = vld [vmem:[%s347 + $0x8] sm:$0xf]
      %v351 = vld [vmem:[%s347 + $0xc] sm:$0xf]
      %v352 = vld [vmem:[%s347 + $0x10] sm:$0xf]
      %v353 = vld [vmem:[%s347 + $0x14] sm:$0xf]
      %v354 = vld [vmem:[%s347 + $0x18] sm:$0xf]
      %v355 = vld [vmem:[%s347 + $0x1c] sm:$0xf]
      %v356 = vld [vmem:[%s347 + $0x20] sm:$0xf]
      %v357 = vld [vmem:[%s347 + $0x24] sm:$0xf]
      %v358 = vld [vmem:[%s347 + $0x28] sm:$0xf]
      %v359 = vld [vmem:[%s347 + $0x2c] sm:$0xf]
      %v360 = vld [vmem:[%s347 + $0x30] sm:$0xf]
      %v361 = vld [vmem:[%s347 + $0x34] sm:$0xf]
      %v362 = vld [vmem:[%s347 + $0x38] sm:$0xf]
      %v363 = vld [vmem:[%s347 + $0x3c] sm:$0xf]
      %v364 = vld [vmem:[%s3 + $0x2] sm:$0x1]
      %v365 = vperm.slane %v364, 0
      %v377 = vunpack.c.l.b16 %v336
      %v378 = vunpack.c.l.b16 %v337
      %v379 = vunpack.c.l.b16 %v338
      %v380 = vunpack.c.l.b16 %v339
      %v381 = vunpack.c.l.b16 %v340
      %v382 = vunpack.c.l.b16 %v341
      %v383 = vunpack.c.l.b16 %v342
      %v384 = vunpack.c.l.b16 %v343
      %v385 = vunpack.c.l.b16 %v344
      %v386 = vunpack.c.l.b16 %v345
      %v387 = vunpack.c.l.b16 %v346
      %v388 = vpack.c.b16 %v378, %v377
      %v389 = vpack.c.b16 %v380, %v379
      %v390 = vpack.c.b16 %v382, %v381
      %v391 = vpack.c.b16 %v384, %v383
      %v392 = vpack.c.b16 %v386, %v385
      %v393 = vpack.c.b16 %v387, %v387
      %v416 = vunpack.c.l.b16 %v348
      %v417 = vunpack.c.l.b16 %v349
      %v418 = vunpack.c.l.b16 %v350
      %v419 = vunpack.c.l.b16 %v351
      %v420 = vunpack.c.l.b16 %v352
      %v421 = vunpack.c.l.b16 %v353
      %v422 = vunpack.c.l.b16 %v354
      %v423 = vunpack.c.l.b16 %v355
      %v424 = vunpack.c.l.b16 %v356
      %v425 = vunpack.c.l.b16 %v357
      %v426 = vunpack.c.l.b16 %v358
      %v427 = vunpack.c.l.b16 %v359
      %v428 = vunpack.c.l.b16 %v360
      %v429 = vunpack.c.l.b16 %v361
      %v430 = vunpack.c.l.b16 %v362
      %v431 = vunpack.c.l.b16 %v363
      %v432 = vpack.c.b16 %v417, %v416
      %v433 = vpack.c.b16 %v419, %v418
      %v434 = vpack.c.b16 %v421, %v420
      %v435 = vpack.c.b16 %v423, %v422
      %v436 = vpack.c.b16 %v425, %v424
      %v437 = vpack.c.b16 %v427, %v426
      %v438 = vpack.c.b16 %v429, %v428
      %v439 = vpack.c.b16 %v431, %v430
      %448 = vmatpush.bf16.msra.mxu0 %v439
      %449 = vmatpush.bf16.msra.mxu0 %v438
      %450 = vmatpush.bf16.msra.mxu0 %v437
      %451 = vmatpush.bf16.msra.mxu0 %v436
      %452 = vmatpush.bf16.msra.mxu0 %v435
      %453 = vmatpush.bf16.msra.mxu0 %v434
      %454 = vmatpush.bf16.msra.mxu0 %v433
      %455 = vmatpush.bf16.msra.mxu0 %v432
      %456 = vmatmul.bf16.gmra.mxu0 %v388
      %v457 = vpop.f32.mrf.mxu0
      %v458 = vadd.f32 %v365, %v457
      %v459 = vpop.f32.mrf.mxu0
      %v460 = vadd.f32 %v365, %v459
      %461 = vmatmul.bf16.gmra.mxu0 %v389
      %v462 = vpop.f32.mrf.mxu0
      %v463 = vadd.f32 %v365, %v462
      %v464 = vpop.f32.mrf.mxu0
      %v465 = vadd.f32 %v365, %v464
      %466 = vmatmul.bf16.gmra.mxu0 %v390
      %v467 = vpop.f32.mrf.mxu0
      %v468 = vadd.f32 %v365, %v467
      %v469 = vpop.f32.mrf.mxu0
      %v470 = vadd.f32 %v365, %v469
      %471 = vmatmul.bf16.gmra.mxu0 %v391
      %v472 = vpop.f32.mrf.mxu0
      %v473 = vadd.f32 %v365, %v472
      %v474 = vpop.f32.mrf.mxu0
      %v475 = vadd.f32 %v365, %v474
      %476 = vmatmul.bf16.gmra.mxu0 %v392
      %v477 = vpop.f32.mrf.mxu0
      %v478 = vadd.f32 %v365, %v477
      %v479 = vpop.f32.mrf.mxu0
      %v480 = vadd.f32 %v365, %v479
      %481 = vmatmul.bf16.gmra.mxu0 %v393
      %v482 = vpop.f32.mrf.mxu0
      %v483 = vadd.f32 %v365, %v482
      %v484 = vpop.f32.mrf.mxu0
      %485 = vdwg.mxu0
      %v486 = vmax.f32 %v458, 0.0
      %v487 = vmax.f32 %v460, 0.0
      %v488 = vmax.f32 %v463, 0.0
      %v489 = vmax.f32 %v465, 0.0
      %v490 = vmax.f32 %v468, 0.0
      %v491 = vmax.f32 %v470, 0.0
      %v492 = vmax.f32 %v473, 0.0
      %v493 = vmax.f32 %v475, 0.0
      %v494 = vmax.f32 %v478, 0.0
      %v495 = vmax.f32 %v480, 0.0
      %v496 = vmax.f32 %v483, 0.0
      %497 = vst [vmem:[#allocation3] sm:$0xff] %v486
      %498 = vst [vmem:[#allocation3 + $0x8] sm:$0xff] %v487
      %499 = vst [vmem:[#allocation3 + $0x10] sm:$0xff] %v488
      %500 = vst [vmem:[#allocation3 + $0x18] sm:$0xff] %v489
      %501 = vst [vmem:[#allocation3 + $0x20] sm:$0xff] %v490
      %502 = vst [vmem:[#allocation3 + $0x28] sm:$0xff] %v491
      %503 = vst [vmem:[#allocation3 + $0x30] sm:$0xff] %v492
      %504 = vst [vmem:[#allocation3 + $0x38] sm:$0xff] %v493
      %505 = vst [vmem:[#allocation3 + $0x40] sm:$0xff] %v494
      %506 = vst [vmem:[#allocation3 + $0x48] sm:$0xff] %v495
      %507 = vst [vmem:[#allocation3 + $0x50] sm:$0xff] %v496
      %v508 = vlaneseq
      %v509 = vand.u32 %v508, 127
      %vm510 = vcmp.ge.s32.totalorder %v509, 0
      %vm511 = vcmp.lt.s32.totalorder %v509, 6
      %vm512 = vmand %vm510, %vm511
      %vm513 = vcmp.ge.s32.totalorder %v509, 6
      %vm514 = vcmp.lt.s32.totalorder %v509, 12
      %vm515 = vmand %vm513, %vm514
      %vm516 = vcmp.ge.s32.totalorder %v509, 12
      %vm517 = vcmp.lt.s32.totalorder %v509, 18
      %vm518 = vmand %vm516, %vm517
      %vm519 = vcmp.ge.s32.totalorder %v509, 18
      %vm520 = vcmp.lt.s32.totalorder %v509, 24
      %vm521 = vmand %vm519, %vm520
      %vm522 = vcmp.ge.s32.totalorder %v509, 24
      %vm523 = vcmp.lt.s32.totalorder %v509, 30
      %vm524 = vmand %vm522, %vm523
      %vm525 = vcmp.ge.s32.totalorder %v509, 30
      %vm526 = vcmp.lt.s32.totalorder %v509, 36
      %vm527 = vmand %vm525, %vm526
      %vm528 = vcmp.ge.s32.totalorder %v509, 36
      %vm529 = vcmp.lt.s32.totalorder %v509, 42
      %vm530 = vmand %vm528, %vm529
      %vm531 = vcmp.ge.s32.totalorder %v509, 42
      %vm532 = vcmp.lt.s32.totalorder %v509, 48
      %vm533 = vmand %vm531, %vm532
      %vm534 = vcmp.ge.s32.totalorder %v509, 48
      %vm535 = vcmp.lt.s32.totalorder %v509, 54
      %vm536 = vmand %vm534, %vm535
      %vm537 = vcmp.ge.s32.totalorder %v509, 54
      %vm538 = vcmp.lt.s32.totalorder %v509, 60
      %vm539 = vmand %vm537, %vm538
      %v540 = vld [vmem:[#allocation2] ss:$10 sm:$0xf]
      %v541 = vsel %vm512, %v540, 0.0
      %s542 = scalar_lea.vmem [#allocation2], 1
      %v543 = vld [vmem:[%s542] ss:$10 sm:$0xf]
      %v544 = vsel %vm515, %v543, 0.0
      %v545 = vadd.f32 %v541, %v544
      %s546 = scalar_lea.vmem [#allocation2], 2
      %v547 = vld [vmem:[%s546] ss:$10 sm:$0xf]
      %v548 = vsel %vm518, %v547, 0.0
      %v549 = vadd.f32 %v545, %v548
      %s550 = scalar_lea.vmem [#allocation2], 3
      %v551 = vld [vmem:[%s550] ss:$10 sm:$0xf]
      %v552 = vsel %vm521, %v551, 0.0
      %v553 = vadd.f32 %v549, %v552
      %s554 = scalar_lea.vmem [#allocation2], 4
      %v555 = vld [vmem:[%s554] ss:$10 sm:$0xf]
      %v556 = vsel %vm524, %v555, 0.0
      %v557 = vadd.f32 %v553, %v556
      %s558 = scalar_lea.vmem [#allocation2], 5
      %v559 = vld [vmem:[%s558] ss:$10 sm:$0xf]
      %v560 = vsel %vm527, %v559, 0.0
      %v561 = vadd.f32 %v557, %v560
      %s562 = scalar_lea.vmem [#allocation2], 6
      %v563 = vld [vmem:[%s562] ss:$10 sm:$0xf]
      %v564 = vsel %vm530, %v563, 0.0
      %v565 = vadd.f32 %v561, %v564
      %s566 = scalar_lea.vmem [#allocation2], 7
      %v567 = vld [vmem:[%s566] ss:$10 sm:$0xf]
      %v568 = vsel %vm533, %v567, 0.0
      %v569 = vadd.f32 %v565, %v568
      %s570 = scalar_lea.vmem [#allocation2], 8
      %v571 = vld [vmem:[%s570] ss:$10 sm:$0xf]
      %v572 = vsel %vm536, %v571, 0.0
      %v573 = vadd.f32 %v569, %v572
      %s574 = scalar_lea.vmem [#allocation2], 9
      %v575 = vld [vmem:[%s574] ss:$10 sm:$0xf]
      %v576 = vsel %vm539, %v575, 0.0
      %v577 = vadd.f32 %v573, %v576
      %v578 = vpack.c.bf16 %v577, %v577
      %s579 = scalar_lea.vmem %s2, 64
      %v580 = vld [vmem:[%s579] sm:$0xf]
      %v581 = vld [vmem:[%s579 + $0x4] sm:$0xf]
      %v582 = vld [vmem:[%s579 + $0x8] sm:$0xf]
      %v583 = vld [vmem:[%s579 + $0xc] sm:$0xf]
      %v584 = vld [vmem:[%s579 + $0x10] sm:$0xf]
      %v585 = vld [vmem:[%s579 + $0x14] sm:$0xf]
      %v586 = vld [vmem:[%s579 + $0x18] sm:$0xf]
      %v587 = vld [vmem:[%s579 + $0x1c] sm:$0xf]
      %v588 = vld [vmem:[%s579 + $0x20] sm:$0xf]
      %v589 = vld [vmem:[%s579 + $0x24] sm:$0xf]
      %v590 = vld [vmem:[%s579 + $0x28] sm:$0xf]
      %v591 = vld [vmem:[%s579 + $0x2c] sm:$0xf]
      %v592 = vld [vmem:[%s579 + $0x30] sm:$0xf]
      %v593 = vld [vmem:[%s579 + $0x34] sm:$0xf]
      %v594 = vld [vmem:[%s579 + $0x38] sm:$0xf]
      %v595 = vld [vmem:[%s579 + $0x3c] sm:$0xf]
      %s596 = scalar_lea.vmem %s2, 128
      %v597 = vld [vmem:[%s596] sm:$0xf]
      %v598 = vld [vmem:[%s596 + $0x4] sm:$0xf]
      %v599 = vld [vmem:[%s596 + $0x8] sm:$0xf]
      %v600 = vld [vmem:[%s596 + $0xc] sm:$0xf]
      %v601 = vld [vmem:[%s596 + $0x10] sm:$0xf]
      %v602 = vld [vmem:[%s596 + $0x14] sm:$0xf]
      %v603 = vld [vmem:[%s596 + $0x18] sm:$0xf]
      %v604 = vld [vmem:[%s596 + $0x1c] sm:$0xf]
      %v605 = vld [vmem:[%s596 + $0x20] sm:$0xf]
      %v606 = vld [vmem:[%s596 + $0x24] sm:$0xf]
      %v607 = vld [vmem:[%s596 + $0x28] sm:$0xf]
      %v608 = vld [vmem:[%s596 + $0x2c] sm:$0xf]
      %v609 = vld [vmem:[%s596 + $0x30] sm:$0xf]
      %v610 = vld [vmem:[%s596 + $0x34] sm:$0xf]
      %v611 = vld [vmem:[%s596 + $0x38] sm:$0xf]
      %v612 = vld [vmem:[%s596 + $0x3c] sm:$0xf]
      %v614 = vunpack.c.l.b16 %v578
      %v615 = vpack.c.b16 %v614, %v614
      %v617 = vshrl.u32 %v615, 16
      %v619 = vshll.u32 %v615, 16
      %v621 = vrot.slane %v619, 1
      %v622 = vor.u32 %v617, %v621
      %v640 = vunpack.c.l.b16 %v597
      %v641 = vunpack.c.l.b16 %v598
      %v642 = vunpack.c.l.b16 %v599
      %v643 = vunpack.c.l.b16 %v600
      %v644 = vunpack.c.l.b16 %v601
      %v645 = vunpack.c.l.b16 %v602
      %v646 = vunpack.c.l.b16 %v603
      %v647 = vunpack.c.l.b16 %v604
      %v648 = vunpack.c.l.b16 %v605
      %v649 = vunpack.c.l.b16 %v606
      %v650 = vunpack.c.l.b16 %v607
      %v651 = vunpack.c.l.b16 %v608
      %v652 = vunpack.c.l.b16 %v609
      %v653 = vunpack.c.l.b16 %v610
      %v654 = vunpack.c.l.b16 %v611
      %v655 = vunpack.c.l.b16 %v612
      %v656 = vpack.c.b16 %v641, %v640
      %v657 = vpack.c.b16 %v643, %v642
      %v658 = vpack.c.b16 %v645, %v644
      %v659 = vpack.c.b16 %v647, %v646
      %v660 = vpack.c.b16 %v649, %v648
      %v661 = vpack.c.b16 %v651, %v650
      %v662 = vpack.c.b16 %v653, %v652
      %v663 = vpack.c.b16 %v655, %v654
      %672 = vmatpush.bf16.msra.mxu0 %v663
      %673 = vmatpush.bf16.msra.mxu0 %v662
      %674 = vmatpush.bf16.msra.mxu0 %v661
      %675 = vmatpush.bf16.msra.mxu0 %v660
      %676 = vmatpush.bf16.msra.mxu0 %v659
      %677 = vmatpush.bf16.msra.mxu0 %v658
      %678 = vmatpush.bf16.msra.mxu0 %v657
      %679 = vmatpush.bf16.msra.mxu0 %v656
      %680 = vmatmul.bf16.gmra.mxu0 %v622
      %v681 = vpop.f32.mrf.mxu0
      %v682 = vadd.f32 0.0, %v681
      %v683 = vpop.f32.mrf.mxu0
      %684 = vdwg.mxu0
      %v701 = vunpack.c.l.b16 %v580
      %v702 = vunpack.c.l.b16 %v581
      %v703 = vunpack.c.l.b16 %v582
      %v704 = vunpack.c.l.b16 %v583
      %v705 = vunpack.c.l.b16 %v584
      %v706 = vunpack.c.l.b16 %v585
      %v707 = vunpack.c.l.b16 %v586
      %v708 = vunpack.c.l.b16 %v587
      %v709 = vunpack.c.l.b16 %v588
      %v710 = vunpack.c.l.b16 %v589
      %v711 = vunpack.c.l.b16 %v590
      %v712 = vunpack.c.l.b16 %v591
      %v713 = vunpack.c.l.b16 %v592
      %v714 = vunpack.c.l.b16 %v593
      %v715 = vunpack.c.l.b16 %v594
      %v716 = vunpack.c.l.b16 %v595
      %v717 = vpack.c.b16 %v702, %v701
      %v718 = vpack.c.b16 %v704, %v703
      %v719 = vpack.c.b16 %v706, %v705
      %v720 = vpack.c.b16 %v708, %v707
      %v721 = vpack.c.b16 %v710, %v709
      %v722 = vpack.c.b16 %v712, %v711
      %v723 = vpack.c.b16 %v714, %v713
      %v724 = vpack.c.b16 %v716, %v715
      %733 = vmatpush.bf16.msra.mxu0 %v724
      %734 = vmatpush.bf16.msra.mxu0 %v723
      %735 = vmatpush.bf16.msra.mxu0 %v722
      %736 = vmatpush.bf16.msra.mxu0 %v721
      %737 = vmatpush.bf16.msra.mxu0 %v720
      %738 = vmatpush.bf16.msra.mxu0 %v719
      %739 = vmatpush.bf16.msra.mxu0 %v718
      %740 = vmatpush.bf16.msra.mxu0 %v717
      %741 = vmatmul.bf16.gmra.mxu0 %v578
      %v742 = vpop.f32.mrf.mxu0
      %v743 = vadd.f32 %v682, %v742
      %v744 = vpop.f32.mrf.mxu0
      %745 = vdwg.mxu0
      %v746 = vld [vmem:[%s3 + $0x1] sm:$0x1]
      %v747 = vperm.slane %v746, 0
      %v748 = vadd.f32 %v743, %v747
      %v749 = vmax.f32 %v748, 0.0
      %vm750 = vcmp.lt.s32.totalorder %v509, 2
      %vm751 = vmand %vm510, %vm750
      %vm752 = vcmp.ge.s32.totalorder %v509, 2
      %vm753 = vcmp.lt.s32.totalorder %v509, 4
      %vm754 = vmand %vm752, %vm753
      %vm755 = vcmp.ge.s32.totalorder %v509, 4
      %vm756 = vmand %vm755, %vm511
      %vm757 = vcmp.lt.s32.totalorder %v509, 8
      %vm758 = vmand %vm513, %vm757
      %vm759 = vcmp.ge.s32.totalorder %v509, 8
      %vm760 = vcmp.lt.s32.totalorder %v509, 10
      %vm761 = vmand %vm759, %vm760
      %v762 = vld [vmem:[#allocation3] ss:$5 sm:$0xff]
      %s763 = scalar_lea.vmem [#allocation3], 40
      %v764 = vld [vmem:[%s763] ss:$5 sm:$0xff]
      %s765 = scalar_lea.vmem [#allocation3], 80
      %v766 = vld [vmem:[%s765] ss:$5 sm:$0x1]
      %v767 = vsel %vm751, %v762, 0.0
      %v768 = vsel %vm751, %v764, 0.0
      %v769 = vsel %vm751, %v766, 0.0
      %s770 = scalar_lea.vmem [#allocation3], 1
      %v771 = vld [vmem:[%s770] ss:$5 sm:$0xff]
      %s772 = scalar_lea.vmem [#allocation3], 41
      %v773 = vld [vmem:[%s772] ss:$5 sm:$0xff]
      %s774 = scalar_lea.vmem [#allocation3], 81
      %v775 = vld [vmem:[%s774] ss:$5 sm:$0x1]
      %v776 = vsel %vm754, %v771, 0.0
      %v777 = vsel %vm754, %v773, 0.0
      %v778 = vsel %vm754, %v775, 0.0
      %v779 = vadd.f32 %v767, %v776
      %v780 = vadd.f32 %v768, %v777
      %v781 = vadd.f32 %v769, %v778
      %s782 = scalar_lea.vmem [#allocation3], 2
      %v783 = vld [vmem:[%s782] ss:$5 sm:$0xff]
      %s784 = scalar_lea.vmem [#allocation3], 42
      %v785 = vld [vmem:[%s784] ss:$5 sm:$0xff]
      %s786 = scalar_lea.vmem [#allocation3], 82
      %v787 = vld [vmem:[%s786] ss:$5 sm:$0x1]
      %v788 = vsel %vm756, %v783, 0.0
      %v789 = vsel %vm756, %v785, 0.0
      %v790 = vsel %vm756, %v787, 0.0
      %v791 = vadd.f32 %v779, %v788
      %v792 = vadd.f32 %v780, %v789
      %v793 = vadd.f32 %v781, %v790
      %s794 = scalar_lea.vmem [#allocation3], 3
      %v795 = vld [vmem:[%s794] ss:$5 sm:$0xff]
      %s796 = scalar_lea.vmem [#allocation3], 43
      %v797 = vld [vmem:[%s796] ss:$5 sm:$0xff]
      %s798 = scalar_lea.vmem [#allocation3], 83
      %v799 = vld [vmem:[%s798] ss:$5 sm:$0x1]
      %v800 = vsel %vm758, %v795, 0.0
      %v801 = vsel %vm758, %v797, 0.0
      %v802 = vsel %vm758, %v799, 0.0
      %v803 = vadd.f32 %v791, %v800
      %v804 = vadd.f32 %v792, %v801
      %v805 = vadd.f32 %v793, %v802
      %s806 = scalar_lea.vmem [#allocation3], 4
      %v807 = vld [vmem:[%s806] ss:$5 sm:$0xff]
      %s808 = scalar_lea.vmem [#allocation3], 44
      %v809 = vld [vmem:[%s808] ss:$5 sm:$0xff]
      %s810 = scalar_lea.vmem [#allocation3], 84
      %v811 = vld [vmem:[%s810] ss:$5 sm:$0x1]
      %v812 = vsel %vm761, %v807, 0.0
      %v813 = vsel %vm761, %v809, 0.0
      %v814 = vsel %vm761, %v811, 0.0
      %v815 = vadd.f32 %v803, %v812
      %v816 = vadd.f32 %v804, %v813
      %v817 = vadd.f32 %v805, %v814
      %v818 = vpack.c.bf16 %v815, %v815
      %v819 = vpack.c.bf16 %v816, %v816
      %v820 = vpack.c.bf16 %v817, %v817
      %s821 = scalar_lea.vmem %s2, 256
      %v822 = vld [vmem:[%s821] sm:$0xf]
      %v823 = vld [vmem:[%s821 + $0x4] sm:$0xf]
      %v824 = vld [vmem:[%s821 + $0x8] sm:$0xf]
      %v825 = vld [vmem:[%s821 + $0xc] sm:$0xf]
      %v826 = vld [vmem:[%s821 + $0x10] sm:$0xf]
      %v827 = vld [vmem:[%s821 + $0x14] sm:$0xf]
      %v828 = vld [vmem:[%s821 + $0x18] sm:$0xf]
      %v829 = vld [vmem:[%s821 + $0x1c] sm:$0xf]
      %v830 = vld [vmem:[%s821 + $0x20] sm:$0xf]
      %v831 = vld [vmem:[%s821 + $0x24] sm:$0xf]
      %v832 = vld [vmem:[%s821 + $0x28] sm:$0xf]
      %v833 = vld [vmem:[%s821 + $0x2c] sm:$0xf]
      %v834 = vld [vmem:[%s821 + $0x30] sm:$0xf]
      %v835 = vld [vmem:[%s821 + $0x34] sm:$0xf]
      %v836 = vld [vmem:[%s821 + $0x38] sm:$0xf]
      %v837 = vld [vmem:[%s821 + $0x3c] sm:$0xf]
      %s838 = scalar_lea.vmem %s2, 320
      %v839 = vld [vmem:[%s838] sm:$0xf]
      %v840 = vld [vmem:[%s838 + $0x4] sm:$0xf]
      %v841 = vld [vmem:[%s838 + $0x8] sm:$0xf]
      %v842 = vld [vmem:[%s838 + $0xc] sm:$0xf]
      %v843 = vld [vmem:[%s838 + $0x10] sm:$0xf]
      %v844 = vld [vmem:[%s838 + $0x14] sm:$0xf]
      %v845 = vld [vmem:[%s838 + $0x18] sm:$0xf]
      %v846 = vld [vmem:[%s838 + $0x1c] sm:$0xf]
      %v847 = vld [vmem:[%s838 + $0x20] sm:$0xf]
      %v848 = vld [vmem:[%s838 + $0x24] sm:$0xf]
      %v849 = vld [vmem:[%s838 + $0x28] sm:$0xf]
      %v850 = vld [vmem:[%s838 + $0x2c] sm:$0xf]
      %v851 = vld [vmem:[%s838 + $0x30] sm:$0xf]
      %v852 = vld [vmem:[%s838 + $0x34] sm:$0xf]
      %v853 = vld [vmem:[%s838 + $0x38] sm:$0xf]
      %v854 = vld [vmem:[%s838 + $0x3c] sm:$0xf]
      %v858 = vunpack.c.l.b16 %v818
      %v859 = vunpack.c.l.b16 %v819
      %v860 = vunpack.c.l.b16 %v820
      %v861 = vpack.c.b16 %v859, %v858
      %v862 = vpack.c.b16 %v860, %v860
      %vm863 = vsmask.f32 7424
      %v865 = vshrl.u32 %v861, 16
      %v867 = vshll.u32 %v861, 16
      %v869 = vrot.slane %v867, 1
      %v870 = vor.u32 %v865, %v869
      %v872 = vshll.u32 %v862, 16
      %v874 = vrot.slane %v872, 1
      %v875 = vsel %vm863, %v870, %v874
      %v893 = vunpack.c.l.b16 %v839
      %v894 = vunpack.c.l.b16 %v840
      %v895 = vunpack.c.l.b16 %v841
      %v896 = vunpack.c.l.b16 %v842
      %v897 = vunpack.c.l.b16 %v843
      %v898 = vunpack.c.l.b16 %v844
      %v899 = vunpack.c.l.b16 %v845
      %v900 = vunpack.c.l.b16 %v846
      %v901 = vunpack.c.l.b16 %v847
      %v902 = vunpack.c.l.b16 %v848
      %v903 = vunpack.c.l.b16 %v849
      %v904 = vunpack.c.l.b16 %v850
      %v905 = vunpack.c.l.b16 %v851
      %v906 = vunpack.c.l.b16 %v852
      %v907 = vunpack.c.l.b16 %v853
      %v908 = vunpack.c.l.b16 %v854
      %v909 = vpack.c.b16 %v894, %v893
      %v910 = vpack.c.b16 %v896, %v895
      %v911 = vpack.c.b16 %v898, %v897
      %v912 = vpack.c.b16 %v900, %v899
      %v913 = vpack.c.b16 %v902, %v901
      %v914 = vpack.c.b16 %v904, %v903
      %v915 = vpack.c.b16 %v906, %v905
      %v916 = vpack.c.b16 %v908, %v907
      %925 = vmatpush.bf16.msra.mxu0 %v916
      %926 = vmatpush.bf16.msra.mxu0 %v915
      %927 = vmatpush.bf16.msra.mxu0 %v914
      %928 = vmatpush.bf16.msra.mxu0 %v913
      %929 = vmatpush.bf16.msra.mxu0 %v912
      %930 = vmatpush.bf16.msra.mxu0 %v911
      %931 = vmatpush.bf16.msra.mxu0 %v910
      %932 = vmatpush.bf16.msra.mxu0 %v909
      %933 = vmatmul.bf16.gmra.mxu0 %v875
      %v934 = vpop.f32.mrf.mxu0
      %v935 = vadd.f32 0.0, %v934
      %v936 = vpop.f32.mrf.mxu0
      %v937 = vadd.f32 0.0, %v936
      %938 = vdwg.mxu0
      %v956 = vunpack.c.l.b16 %v822
      %v957 = vunpack.c.l.b16 %v823
      %v958 = vunpack.c.l.b16 %v824
      %v959 = vunpack.c.l.b16 %v825
      %v960 = vunpack.c.l.b16 %v826
      %v961 = vunpack.c.l.b16 %v827
      %v962 = vunpack.c.l.b16 %v828
      %v963 = vunpack.c.l.b16 %v829
      %v964 = vunpack.c.l.b16 %v830
      %v965 = vunpack.c.l.b16 %v831
      %v966 = vunpack.c.l.b16 %v832
      %v967 = vunpack.c.l.b16 %v833
      %v968 = vunpack.c.l.b16 %v834
      %v969 = vunpack.c.l.b16 %v835
      %v970 = vunpack.c.l.b16 %v836
      %v971 = vunpack.c.l.b16 %v837
      %v972 = vpack.c.b16 %v957, %v956
      %v973 = vpack.c.b16 %v959, %v958
      %v974 = vpack.c.b16 %v961, %v960
      %v975 = vpack.c.b16 %v963, %v962
      %v976 = vpack.c.b16 %v965, %v964
      %v977 = vpack.c.b16 %v967, %v966
      %v978 = vpack.c.b16 %v969, %v968
      %v979 = vpack.c.b16 %v971, %v970
      %988 = vmatpush.bf16.msra.mxu0 %v979
      %989 = vmatpush.bf16.msra.mxu0 %v978
      %990 = vmatpush.bf16.msra.mxu0 %v977
      %991 = vmatpush.bf16.msra.mxu0 %v976
      %992 = vmatpush.bf16.msra.mxu0 %v975
      %993 = vmatpush.bf16.msra.mxu0 %v974
      %994 = vmatpush.bf16.msra.mxu0 %v973
      %995 = vmatpush.bf16.msra.mxu0 %v972
      %996 = vmatmul.bf16.gmra.mxu0 %v861
      %v997 = vpop.f32.mrf.mxu0
      %v998 = vadd.f32 %v935, %v997
      %v999 = vpop.f32.mrf.mxu0
      %v1000 = vadd.f32 %v937, %v999
      %1001 = vdwg.mxu0
      %v1002 = vld [vmem:[%s3 + $0x3] sm:$0x1]
      %v1003 = vperm.slane %v1002, 0
      %v1004 = vadd.f32 %v998, %v1003
      %v1005 = vadd.f32 %v1000, %v1003
      %v1006 = vmax.f32 %v1004, 0.0
      %v1007 = vmax.f32 %v1005, 0.0
      %1008 = vst [vmem:[#allocation4] sm:$0xff] %v1006
      %1009 = vst [vmem:[#allocation4 + $0x8] sm:$0xff] %v1007
      %v1010 = vld [vmem:[#allocation4] ss:$4 sm:$0xf]
      %v1011 = vsel %vm751, %v1010, 0.0
      %s1012 = scalar_lea.vmem [#allocation4], 1
      %v1013 = vld [vmem:[%s1012] ss:$4 sm:$0xf]
      %v1014 = vsel %vm754, %v1013, 0.0
      %v1015 = vadd.f32 %v1011, %v1014
      %s1016 = scalar_lea.vmem [#allocation4], 2
      %v1017 = vld [vmem:[%s1016] ss:$4 sm:$0xf]
      %v1018 = vsel %vm756, %v1017, 0.0
      %v1019 = vadd.f32 %v1015, %v1018
      %s1020 = scalar_lea.vmem [#allocation4], 3
      %v1021 = vld [vmem:[%s1020] ss:$4 sm:$0xf]
      %v1022 = vsel %vm758, %v1021, 0.0
      %v1023 = vadd.f32 %v1019, %v1022
      %v1024 = vpack.c.bf16 %v1023, %v1023
      %s1025 = scalar_lea.vmem %s2, 384
      %v1026 = vld [vmem:[%s1025] sm:$0xf]
      %v1027 = vld [vmem:[%s1025 + $0x4] sm:$0xf]
      %v1028 = vld [vmem:[%s1025 + $0x8] sm:$0xf]
      %v1029 = vld [vmem:[%s1025 + $0xc] sm:$0xf]
      %v1030 = vld [vmem:[%s1025 + $0x10] sm:$0xf]
      %v1031 = vld [vmem:[%s1025 + $0x14] sm:$0xf]
      %v1032 = vld [vmem:[%s1025 + $0x18] sm:$0xf]
      %v1033 = vld [vmem:[%s1025 + $0x1c] sm:$0xf]
      %v1034 = vld [vmem:[%s1025 + $0x20] sm:$0xf]
      %v1035 = vld [vmem:[%s1025 + $0x24] sm:$0xf]
      %v1036 = vld [vmem:[%s1025 + $0x28] sm:$0xf]
      %v1037 = vld [vmem:[%s1025 + $0x2c] sm:$0xf]
      %v1038 = vld [vmem:[%s1025 + $0x30] sm:$0xf]
      %v1039 = vld [vmem:[%s1025 + $0x34] sm:$0xf]
      %v1040 = vld [vmem:[%s1025 + $0x38] sm:$0xf]
      %v1041 = vld [vmem:[%s1025 + $0x3c] sm:$0xf]
      %s1042 = scalar_lea.vmem %s2, 448
      %v1043 = vld [vmem:[%s1042] sm:$0xf]
      %v1044 = vld [vmem:[%s1042 + $0x4] sm:$0xf]
      %v1045 = vld [vmem:[%s1042 + $0x8] sm:$0xf]
      %v1046 = vld [vmem:[%s1042 + $0xc] sm:$0xf]
      %v1047 = vld [vmem:[%s1042 + $0x10] sm:$0xf]
      %v1048 = vld [vmem:[%s1042 + $0x14] sm:$0xf]
      %v1049 = vld [vmem:[%s1042 + $0x18] sm:$0xf]
      %v1050 = vld [vmem:[%s1042 + $0x1c] sm:$0xf]
      %v1051 = vld [vmem:[%s1042 + $0x20] sm:$0xf]
      %v1052 = vld [vmem:[%s1042 + $0x24] sm:$0xf]
      %v1053 = vld [vmem:[%s1042 + $0x28] sm:$0xf]
      %v1054 = vld [vmem:[%s1042 + $0x2c] sm:$0xf]
      %v1055 = vld [vmem:[%s1042 + $0x30] sm:$0xf]
      %v1056 = vld [vmem:[%s1042 + $0x34] sm:$0xf]
      %v1057 = vld [vmem:[%s1042 + $0x38] sm:$0xf]
      %v1058 = vld [vmem:[%s1042 + $0x3c] sm:$0xf]
      %v1060 = vunpack.c.l.b16 %v1024
      %v1061 = vpack.c.b16 %v1060, %v1060
      %v1063 = vshrl.u32 %v1061, 16
      %v1065 = vshll.u32 %v1061, 16
      %v1067 = vrot.slane %v1065, 1
      %v1068 = vor.u32 %v1063, %v1067
      %v1086 = vunpack.c.l.b16 %v1043
      %v1087 = vunpack.c.l.b16 %v1044
      %v1088 = vunpack.c.l.b16 %v1045
      %v1089 = vunpack.c.l.b16 %v1046
      %v1090 = vunpack.c.l.b16 %v1047
      %v1091 = vunpack.c.l.b16 %v1048
      %v1092 = vunpack.c.l.b16 %v1049
      %v1093 = vunpack.c.l.b16 %v1050
      %v1094 = vunpack.c.l.b16 %v1051
      %v1095 = vunpack.c.l.b16 %v1052
      %v1096 = vunpack.c.l.b16 %v1053
      %v1097 = vunpack.c.l.b16 %v1054
      %v1098 = vunpack.c.l.b16 %v1055
      %v1099 = vunpack.c.l.b16 %v1056
      %v1100 = vunpack.c.l.b16 %v1057
      %v1101 = vunpack.c.l.b16 %v1058
      %v1102 = vpack.c.b16 %v1087, %v1086
      %v1103 = vpack.c.b16 %v1089, %v1088
      %v1104 = vpack.c.b16 %v1091, %v1090
      %v1105 = vpack.c.b16 %v1093, %v1092
      %v1106 = vpack.c.b16 %v1095, %v1094
      %v1107 = vpack.c.b16 %v1097, %v1096
      %v1108 = vpack.c.b16 %v1099, %v1098
      %v1109 = vpack.c.b16 %v1101, %v1100
      %1118 = vmatpush.bf16.msra.mxu0 %v1109
      %1119 = vmatpush.bf16.msra.mxu0 %v1108
      %1120 = vmatpush.bf16.msra.mxu0 %v1107
      %1121 = vmatpush.bf16.msra.mxu0 %v1106
      %1122 = vmatpush.bf16.msra.mxu0 %v1105
      %1123 = vmatpush.bf16.msra.mxu0 %v1104
      %1124 = vmatpush.bf16.msra.mxu0 %v1103
      %1125 = vmatpush.bf16.msra.mxu0 %v1102
      %1126 = vmatmul.bf16.gmra.mxu0 %v1068
      %v1127 = vpop.f32.mrf.mxu0
      %v1128 = vadd.f32 0.0, %v1127
      %v1129 = vpop.f32.mrf.mxu0
      %1130 = vdwg.mxu0
      %v1147 = vunpack.c.l.b16 %v1026
      %v1148 = vunpack.c.l.b16 %v1027
      %v1149 = vunpack.c.l.b16 %v1028
      %v1150 = vunpack.c.l.b16 %v1029
      %v1151 = vunpack.c.l.b16 %v1030
      %v1152 = vunpack.c.l.b16 %v1031
      %v1153 = vunpack.c.l.b16 %v1032
      %v1154 = vunpack.c.l.b16 %v1033
      %v1155 = vunpack.c.l.b16 %v1034
      %v1156 = vunpack.c.l.b16 %v1035
      %v1157 = vunpack.c.l.b16 %v1036
      %v1158 = vunpack.c.l.b16 %v1037
      %v1159 = vunpack.c.l.b16 %v1038
      %v1160 = vunpack.c.l.b16 %v1039
      %v1161 = vunpack.c.l.b16 %v1040
      %v1162 = vunpack.c.l.b16 %v1041
      %v1163 = vpack.c.b16 %v1148, %v1147
      %v1164 = vpack.c.b16 %v1150, %v1149
      %v1165 = vpack.c.b16 %v1152, %v1151
      %v1166 = vpack.c.b16 %v1154, %v1153
      %v1167 = vpack.c.b16 %v1156, %v1155
      %v1168 = vpack.c.b16 %v1158, %v1157
      %v1169 = vpack.c.b16 %v1160, %v1159
      %v1170 = vpack.c.b16 %v1162, %v1161
      %1179 = vmatpush.bf16.msra.mxu0 %v1170
      %1180 = vmatpush.bf16.msra.mxu0 %v1169
      %1181 = vmatpush.bf16.msra.mxu0 %v1168
      %1182 = vmatpush.bf16.msra.mxu0 %v1167
      %1183 = vmatpush.bf16.msra.mxu0 %v1166
      %1184 = vmatpush.bf16.msra.mxu0 %v1165
      %1185 = vmatpush.bf16.msra.mxu0 %v1164
      %1186 = vmatpush.bf16.msra.mxu0 %v1163
      %1187 = vmatmul.bf16.gmra.mxu0 %v1024
      %v1188 = vpop.f32.mrf.mxu0
      %v1189 = vadd.f32 %v1128, %v1188
      %v1190 = vpop.f32.mrf.mxu0
      %1191 = vdwg.mxu0
      %v1192 = vld [vmem:[%s3 + $0x4] sm:$0x1]
      %v1193 = vperm.slane %v1192, 0
      %v1194 = vadd.f32 %v1189, %v1193
      %v1195 = vmax.f32 %v1194, 0.0
      %v1196 = vadd.f32 %v749, %v1195
      %1197 = vst [vmem:[%s215] sm:$0x7] %v1196
      %p1198 = scmp.lt.s32.totalorder %s15, 1
      %s1199 = scalar_select %p1198, %s15, 1
      %s1200 = smul.addr %s1199, 4
      %s1201 = scalar_lea.vmem %s4, %s1200
      // Predicated region
      $region37: #{multipath_forward.1} parent=35 // pred_check
        %p1202 = pneg %p127
      $region38: #{multipath_forward.1} parent=35 // pred_check_branch
        %1204 = sbr.rel (%p1202) target = $region40
      $region39: #{multipath_forward.1} parent=35 // pred_region
        _
      $region40: #{multipath_forward.1} parent=35 // pred_fallthru
        _
    $region36: #{multipath_forward.1} parent=5 // pred_fallthru
      _
    %p1205 = scmp.le.s32.totalorder 2, %s10
    // Predicated region
    $region41: #{multipath_forward.1} parent=5 // pred_check
      %p1206 = pneg %p1205
    $region42: #{multipath_forward.1} parent=5 // pred_check_branch
      %1208 = sbr.rel (%p1206) target = $region44
    $region43: #{multipath_forward.1} parent=5 // pred_region
      %s1209 = ssub.s32 %s10, 2
      // Predicated region
      $region45: #{multipath_forward.1} parent=43 // pred_check
        %p1210 = pneg %p133
      $region46: #{multipath_forward.1} parent=43 // pred_check_branch
        %1212 = sbr.rel (%p1210) target = $region48
      $region47: #{multipath_forward.1} parent=43 // pred_region
        %p1213 = scmp.lt.s32.totalorder %s16, 1
        %s1214 = scalar_select %p1213, %s16, 1
        %s1215 = smul.addr %s1214, 4
        %s1216 = scalar_lea.vmem %s4, %s1215
      $region48: #{multipath_forward.1} parent=43 // pred_fallthru
        _
    $region44: #{multipath_forward.1} parent=5 // pred_fallthru
      _
  $region6: #{multipath_forward.1} parent=0 // loop_footer
    %s14 = sadd.s32 1, %s10
  $region7: #{multipath_forward.1} parent=0 // loop_footer_branch
    %9 = sbr.rel target = $region3
  $region8: #{multipath_forward.1} parent=0 // loop_exit
    _

</llo_original>
